<compile_context>
chip_gen: v5e
topology: v5e:2x2
jax: 0.10.0
libtpu: 0.0.40
codegen_flags: <defaults>
</compile_context>

<pallas_src>
from typing import List, Sequence, Tuple

import numpy as np
import jax
import jax.numpy as jnp
from jax.experimental import pallas as pl
from jax.experimental.pallas import tpu as pltpu

LANE = 128


def _round_up(x: int, m: int) -> int:
    return ((x + m - 1) // m) * m


def _choose_batch_tile(B: int, requested=None) -> int:
    """Pick a batch tile: >=512-row floor, ~8 grid steps for large B, <= B."""
    B8 = _round_up(max(B, 1), 8)
    if requested is not None:
        return min(_round_up(requested, 8), B8)
    tile = max(512, _round_up(pl.cdiv(B8, 8), 8))
    return min(tile, B8)


# ---------------------------------------------------------------------------
# Pallas kernel: the whole MLP fused (matmuls + bias + ReLU)
# ---------------------------------------------------------------------------
def _make_mlp_kernel(num_layers: int):
    def kernel(*refs):
        # refs = (x_ref, w0, b0, w1, b1, ..., w_{L-1}, b_{L-1}, o_ref)
        x_ref = refs[0]
        o_ref = refs[-1]
        params = refs[1:-1]

        # Input arrives f32 at its true (unpadded) width; cast to bf16 on the
        # VPU so every matmul runs the MXU bf16 path.
        h = x_ref[...].astype(jnp.bfloat16)
        for i in range(num_layers):
            w = params[2 * i][...]        # bf16 (fin[, padded], fout_pad)
            b = params[2 * i + 1][...]    # f32  (1, fout_pad)
            acc = jnp.dot(h, w, preferred_element_type=jnp.float32) + b
            if i < num_layers - 1:
                acc = jnp.maximum(acc, 0.0)      # ReLU in f32
                h = acc.astype(jnp.bfloat16)     # bf16 for next MXU matmul
            else:
                h = acc
        o_ref[...] = h.astype(o_ref.dtype)       # bf16, lane-dense store

    return kernel


# ---------------------------------------------------------------------------
# Wrapper
# ---------------------------------------------------------------------------
def prober_forward(e: jax.Array,
                   padded_params: Sequence[Tuple[jax.Array, jax.Array]],
                   out_dim: int,
                   *,
                   batch_tile: int = None) -> jax.Array:
    """Run the fused Prober MLP kernel.

    e:              (B, embedding) float32 (fed to the kernel unpadded)
    padded_params:  [(W bf16, b f32)]; layer 0 has fin = embedding (unpadded),
                    all fout (and fin of later layers) padded to 128.
    returns:        (B, out_dim) float32
    """
    B, emb = e.shape
    num_layers = len(padded_params)
    assert padded_params[0][0].shape[0] == emb
    out_pad = padded_params[-1][0].shape[1]

    tile = _choose_batch_tile(B, batch_tile)
    B_pad = _round_up(B, tile)
    x = e if B_pad == B else jnp.pad(e, ((0, B_pad - B), (0, 0)))

    grid = (B_pad // tile,)

    # Input block: last dim == full array dim (emb), so the (8,128) rule's
    # full-extent exception applies — no lane padding, no extra HBM pass.
    in_specs = [pl.BlockSpec((tile, emb), lambda i: (i, 0))]
    flat_params = []
    for (w, b) in padded_params:
        in_specs.append(pl.BlockSpec(w.shape, lambda i: (0, 0)))
        in_specs.append(pl.BlockSpec(b.shape, lambda i: (0, 0)))
        flat_params.extend([w, b])

    # Lane-dense bf16 output (out_pad multiple of 128) -> unmasked stores,
    # half the writeback bytes of f32.
    out_spec = pl.BlockSpec((tile, out_pad), lambda i: (i, 0))

    flops = 2 * B_pad * sum(int(w.shape[0]) * int(w.shape[1])
                            for w, _ in padded_params)
    bytes_accessed = (B_pad * emb * 4
                      + sum(w.size * 2 + b.size * 4 for w, b in padded_params)
                      + B_pad * out_pad * 2)
    cost = pl.CostEstimate(flops=int(flops), transcendentals=0,
                           bytes_accessed=int(bytes_accessed))

    out = pl.pallas_call(
        _make_mlp_kernel(num_layers),
        out_shape=jax.ShapeDtypeStruct((B_pad, out_pad), jnp.bfloat16),
        grid_spec=pltpu.PrefetchScalarGridSpec(
            num_scalar_prefetch=0,
            grid=grid,
            in_specs=in_specs,
            out_specs=out_spec,
        ),
        compiler_params=pltpu.CompilerParams(
            dimension_semantics=("parallel",),
            # Footprint at tile=512 / 128-lane widths is ~1 MiB with double
            # buffering — far under scoped defaults on v5e/v6e/v7x.
            vmem_limit_bytes=32 * 1024 * 1024,
        ),
        cost_estimate=cost,
    )(x, *flat_params)

    # Tiny (B, out_dim) slice; cast back to f32 to match PyTorch output dtype.
    return out[:B, :out_dim].astype(jnp.float32)


# ---------------------------------------------------------------------------
# Parameter construction (mirrors Prober.__init__ shapes) + TPU padding
# ---------------------------------------------------------------------------
def init_prober_params(key, embedding: int, arch: str,
                       output_shape: List[int]):
    output_dim = int(np.prod(output_shape))
    arch_list = list(map(int, arch.split('-'))) if arch != '' else []
    f = [embedding] + arch_list + [output_dim]

    params = []
    for i in range(len(f) - 1):
        key, kw, kb = jax.random.split(key, 3)
        fan_in, fan_out = f[i], f[i + 1]
        bound = 1.0 / np.sqrt(fan_in)   # PyTorch Linear default uniform bound
        w = jax.random.uniform(kw, (fan_in, fan_out), jnp.float32,
                               minval=-bound, maxval=bound)
        b = jax.random.uniform(kb, (1, fan_out), jnp.float32,
                               minval=-bound, maxval=bound)
        params.append((w, b))
    return params, output_dim


def pad_params_for_tpu(params):
    """Zero-pad fout (and fin of layers > 0) to 128; weights -> bf16.

    Layer 0 keeps fin = embedding unpadded so the raw input can be fed to the
    kernel without a padded copy. Zero padding is exact for Linear+ReLU.
    """
    padded = []
    for li, (w, b) in enumerate(params):
        fin, fout = w.shape
        fin_p = fin if li == 0 else _round_up(fin, LANE)
        fout_p = _round_up(fout, LANE)
        w_p = jnp.zeros((fin_p, fout_p), jnp.float32).at[:fin, :fout].set(w)
        b_p = jnp.zeros((1, fout_p), jnp.float32).at[:, :fout].set(b)
        padded.append((w_p.astype(jnp.bfloat16), b_p))
    return padded


# Pure-JAX f32 reference for the correctness sanity check.
def prober_reference(e, params):
    h = e
    for i, (w, b) in enumerate(params):
        h = h @ w + b
        if i < len(params) - 1:
            h = jnp.maximum(h, 0.0)
    return h


# ---------------------------------------------------------------------------
if __name__ == "__main__":
    # Prober-consistent configuration.  batch=2048 with the auto tile of 512
    # gives grid=(4,): one big serial loop on v5e/v6e, 2 pipelined steps per
    # TensorCore on v7x.
    embedding = 32
    arch = "64-32"            # Linear/ReLU/Linear/ReLU/Linear
    output_shape = [2, 2]     # output_dim = 4
    batch = 2048

    key = jax.random.PRNGKey(0)
    key, k_e = jax.random.split(key)
    e = jax.random.normal(k_e, (batch, embedding), jnp.float32)

    params, output_dim = init_prober_params(key, embedding, arch, output_shape)
    padded_params = pad_params_for_tpu(params)

    out = prober_forward(e, padded_params, output_dim)
    out = jax.block_until_ready(out)

    # Sanity check vs. plain-JAX f32 reference of the same MLP.  Kernel uses
    # bf16 weights/activations/output with f32 accumulation -> bf16 tolerance.
    ref = jax.block_until_ready(prober_reference(e, params))
    assert out.shape == (batch, output_dim)
    np.testing.assert_allclose(np.asarray(out), np.asarray(ref),
                               rtol=3e-2, atol=3e-2)

    print("KERNEL_OK")
</pallas_src>

<mosaic_0001>
module attributes {stable_mosaic.version = 11 : i64} {
  func.func @kernel(%arg0: i32, %arg1: memref<512x32xf32, #tpu.memory_space<vmem>>, %arg2: memref<32x128xbf16, #tpu.memory_space<vmem>>, %arg3: memref<1x128xf32, #tpu.memory_space<vmem>>, %arg4: memref<128x128xbf16, #tpu.memory_space<vmem>>, %arg5: memref<1x128xf32, #tpu.memory_space<vmem>>, %arg6: memref<128x128xbf16, #tpu.memory_space<vmem>>, %arg7: memref<1x128xf32, #tpu.memory_space<vmem>>, %arg8: memref<512x128xbf16, #tpu.memory_space<vmem>>) attributes {dimension_semantics = [#tpu.dimension_semantics<parallel>], iteration_bounds = array<i64: 4>, scalar_prefetch = 0 : i64, scratch_operands = 0 : i64, tpu.core_type = #tpu.core_type<tc>, window_params = [{transform_indices = @transform_0, window_bounds = array<i64: 512, 32>}, {pipeline_mode = #tpu.pipeline_mode<synchronous>, transform_indices = @transform_1, window_bounds = array<i64: 32, 128>}, {pipeline_mode = #tpu.pipeline_mode<synchronous>, transform_indices = @transform_2, window_bounds = array<i64: 1, 128>}, {pipeline_mode = #tpu.pipeline_mode<synchronous>, transform_indices = @transform_3, window_bounds = array<i64: 128, 128>}, {pipeline_mode = #tpu.pipeline_mode<synchronous>, transform_indices = @transform_4, window_bounds = array<i64: 1, 128>}, {pipeline_mode = #tpu.pipeline_mode<synchronous>, transform_indices = @transform_5, window_bounds = array<i64: 128, 128>}, {pipeline_mode = #tpu.pipeline_mode<synchronous>, transform_indices = @transform_6, window_bounds = array<i64: 1, 128>}, {transform_indices = @transform_7, window_bounds = array<i64: 512, 128>}]} {
    %c0 = arith.constant 0 : index
    %c0_0 = arith.constant 0 : index
    %0 = vector.load %arg1[%c0, %c0_0] : memref<512x32xf32, #tpu.memory_space<vmem>>, vector<512x32xf32>
    %1 = arith.truncf %0 : vector<512x32xf32> to vector<512x32xbf16>
    %c0_1 = arith.constant 0 : index
    %c0_2 = arith.constant 0 : index
    %2 = vector.load %arg2[%c0_1, %c0_2] : memref<32x128xbf16, #tpu.memory_space<vmem>>, vector<32x128xbf16>
    %c0_3 = arith.constant 0 : index
    %c0_4 = arith.constant 0 : index
    %3 = vector.load %arg3[%c0_3, %c0_4] : memref<1x128xf32, #tpu.memory_space<vmem>>, vector<1x128xf32>
    %cst = arith.constant dense<0.000000e+00> : vector<512x128xf32>
    %4 = tpu.matmul %1, %2, %cst {dimension_numbers = #tpu.dot_dimension_numbers<[1], [0], [0], [1], [0, 0, 1, 1], [], []>} : vector<512x32xbf16>, vector<32x128xbf16>, vector<512x128xf32> -> vector<512x128xf32>
    %5 = vector.broadcast %3 : vector<1x128xf32> to vector<512x128xf32>
    %6 = arith.addf %4, %5 : vector<512x128xf32>
    %cst_5 = arith.constant 0.000000e+00 : f32
    %7 = vector.broadcast %cst_5 : f32 to vector<512x128xf32>
    %8 = arith.maximumf %6, %7 : vector<512x128xf32>
    %9 = arith.truncf %8 : vector<512x128xf32> to vector<512x128xbf16>
    %c0_6 = arith.constant 0 : index
    %c0_7 = arith.constant 0 : index
    %10 = vector.load %arg4[%c0_6, %c0_7] : memref<128x128xbf16, #tpu.memory_space<vmem>>, vector<128x128xbf16>
    %c0_8 = arith.constant 0 : index
    %c0_9 = arith.constant 0 : index
    %11 = vector.load %arg5[%c0_8, %c0_9] : memref<1x128xf32, #tpu.memory_space<vmem>>, vector<1x128xf32>
    %cst_10 = arith.constant dense<0.000000e+00> : vector<512x128xf32>
    %12 = tpu.matmul %9, %10, %cst_10 {dimension_numbers = #tpu.dot_dimension_numbers<[1], [0], [0], [1], [0, 0, 1, 1], [], []>} : vector<512x128xbf16>, vector<128x128xbf16>, vector<512x128xf32> -> vector<512x128xf32>
    %13 = vector.broadcast %11 : vector<1x128xf32> to vector<512x128xf32>
    %14 = arith.addf %12, %13 : vector<512x128xf32>
    %cst_11 = arith.constant 0.000000e+00 : f32
    %15 = vector.broadcast %cst_11 : f32 to vector<512x128xf32>
    %16 = arith.maximumf %14, %15 : vector<512x128xf32>
    %17 = arith.truncf %16 : vector<512x128xf32> to vector<512x128xbf16>
    %c0_12 = arith.constant 0 : index
    %c0_13 = arith.constant 0 : index
    %18 = vector.load %arg6[%c0_12, %c0_13] : memref<128x128xbf16, #tpu.memory_space<vmem>>, vector<128x128xbf16>
    %c0_14 = arith.constant 0 : index
    %c0_15 = arith.constant 0 : index
    %19 = vector.load %arg7[%c0_14, %c0_15] : memref<1x128xf32, #tpu.memory_space<vmem>>, vector<1x128xf32>
    %cst_16 = arith.constant dense<0.000000e+00> : vector<512x128xf32>
    %20 = tpu.matmul %17, %18, %cst_16 {dimension_numbers = #tpu.dot_dimension_numbers<[1], [0], [0], [1], [0, 0, 1, 1], [], []>} : vector<512x128xbf16>, vector<128x128xbf16>, vector<512x128xf32> -> vector<512x128xf32>
    %21 = vector.broadcast %19 : vector<1x128xf32> to vector<512x128xf32>
    %22 = arith.addf %20, %21 : vector<512x128xf32>
    %23 = arith.truncf %22 : vector<512x128xf32> to vector<512x128xbf16>
    %c0_17 = arith.constant 0 : index
    %c0_18 = arith.constant 0 : index
    %24 = vector.load %arg8[%c0_17, %c0_18] : memref<512x128xbf16, #tpu.memory_space<vmem>>, vector<512x128xbf16>
    tpu.vector_store %arg8[%c0_17, %c0_18], %23 {strides = array<i32>} : memref<512x128xbf16, #tpu.memory_space<vmem>>, vector<512x128xbf16>,
    return
  }
  func.func @transform_0(%arg0: i32) -> (i32, i32) {
    %c0_i32 = arith.constant 0 : i32
    %c0_i32_0 = arith.constant 0 : i32
    return %arg0, %c0_i32 : i32, i32
  }
  func.func @transform_1(%arg0: i32) -> (i32, i32) {
    %c0_i32 = arith.constant 0 : i32
    %c0_i32_0 = arith.constant 0 : i32
    %c0_i32_1 = arith.constant 0 : i32
    return %c0_i32, %c0_i32_0 : i32, i32
  }
  func.func @transform_2(%arg0: i32) -> (i32, i32) {
    %c0_i32 = arith.constant 0 : i32
    %c0_i32_0 = arith.constant 0 : i32
    %c0_i32_1 = arith.constant 0 : i32
    return %c0_i32, %c0_i32_0 : i32, i32
  }
  func.func @transform_3(%arg0: i32) -> (i32, i32) {
    %c0_i32 = arith.constant 0 : i32
    %c0_i32_0 = arith.constant 0 : i32
    %c0_i32_1 = arith.constant 0 : i32
    return %c0_i32, %c0_i32_0 : i32, i32
  }
  func.func @transform_4(%arg0: i32) -> (i32, i32) {
    %c0_i32 = arith.constant 0 : i32
    %c0_i32_0 = arith.constant 0 : i32
    %c0_i32_1 = arith.constant 0 : i32
    return %c0_i32, %c0_i32_0 : i32, i32
  }
  func.func @transform_5(%arg0: i32) -> (i32, i32) {
    %c0_i32 = arith.constant 0 : i32
    %c0_i32_0 = arith.constant 0 : i32
    %c0_i32_1 = arith.constant 0 : i32
    return %c0_i32, %c0_i32_0 : i32, i32
  }
  func.func @transform_6(%arg0: i32) -> (i32, i32) {
    %c0_i32 = arith.constant 0 : i32
    %c0_i32_0 = arith.constant 0 : i32
    %c0_i32_1 = arith.constant 0 : i32
    return %c0_i32, %c0_i32_0 : i32, i32
  }
  func.func @transform_7(%arg0: i32) -> (i32, i32) {
    %c0_i32 = arith.constant 0 : i32
    %c0_i32_0 = arith.constant 0 : i32
    return %arg0, %c0_i32 : i32, i32
  }
}

</mosaic_0001>

<llo_original>
// kernel: tpu_custom_call.1
$region0: #{tpu_custom_call.1}
  #allocation0 [shape = 'u32[]', space=smem, size = 0x4, offset = 0x4, fixed_abs, tag = 'smem constant byte address 0x4 - core index']
  #allocation1 [shape = 'u32[72,128]{1,0:T(1,128)}', space=vmem, size = 0x9000, scoped, tag = 'internal scratch']
  %s0 = inlined_call_operand.vmem [shape: f32[2048,32], index: 0, kind: input, shape index: {}]
  %s1 = inlined_call_operand.vmem [shape: bf16[32,128], index: 1, kind: input, shape index: {}]
  %s2 = inlined_call_operand.vmem [shape: f32[1,128], index: 2, kind: input, shape index: {}]
  %s3 = inlined_call_operand.vmem [shape: bf16[128,128], index: 3, kind: input, shape index: {}]
  %s4 = inlined_call_operand.vmem [shape: f32[1,128], index: 4, kind: input, shape index: {}]
  %s5 = inlined_call_operand.vmem [shape: bf16[128,128], index: 5, kind: input, shape index: {}]
  %s6 = inlined_call_operand.vmem [shape: f32[1,128], index: 6, kind: input, shape index: {}]
  %s7 = inlined_call_operand.hbm [shape: bf16[2048,128], index: 7, kind: output, shape index: {}]
  %s8 = sld [smem:[#allocation0]]
  $region61: #{tpu_custom_call.1} parent=0
    _
  %s10 = ssub.s32 1, %s8
  %s11 = scalar_select 0, %s10, %s8
  $region1: #{tpu_custom_call.1} parent=0
    #allocation2 [shape = 'u8[262144]{0}', space=vmem, size = 0x40000, scoped, tag = 'output window, operand 0']
    #allocation3 [shape = 's32[2]{0}', space=sflag, size = 0x8, scoped, tag = 'scoped memory for tpu_custom_call.1']
    %12 = vsyncpa [#allocation3], 0
    %s13 = scalar_lea.sflag [#allocation3], 1
    %14 = vsyncpa %s13, 0
    loop: start=0, step=1, limit=6
    $region2: #{tpu_custom_call.1} parent=1 // loop_pre_header
      _
    $region3: #{tpu_custom_call.1} parent=1 // loop_header
      %s16 = sphi 0, %s20
      %p17 = scmp.ge.s32.totalorder %s16, 6
      %s26 = sphi 0, %s28
      %s29 = sphi 0, %s26
      %s30 = sphi 0, %s29
      %s46 = sphi 0, %s30
      %s50 = sphi 0, %s50
      %s52 = sphi 0, %s50
      %s53 = sphi 0, %s52
      %s67 = sphi 0, %s53
      %s71 = sphi 0, %s71
      %s73 = sphi 0, %s71
      %s74 = sphi 0, %s73
      %s88 = sphi 0, %s74
      %s92 = sphi 0, %s92
      %s94 = sphi 0, %s92
      %s95 = sphi 0, %s94
      %s109 = sphi 0, %s95
      %s113 = sphi 0, %s113
      %s115 = sphi 0, %s113
      %s116 = sphi 0, %s115
      %s130 = sphi 0, %s116
      %s134 = sphi 0, %s134
      %s136 = sphi 0, %s134
      %s137 = sphi 0, %s136
      %s151 = sphi 0, %s137
      %s155 = sphi 0, %s155
      %s157 = sphi 0, %s155
      %s158 = sphi 0, %s157
      %s172 = sphi 0, %s158
      %s178 = sphi 0, %s180
      %s181 = sphi 0, %s178
      %s182 = sphi 0, %s181
      %s198 = sphi 0, %s182
    $region4: #{tpu_custom_call.1} parent=1 // loop_header_branch
      %19 = sbr.rel (%p17) target = $region8
    $region5: #{tpu_custom_call.1} parent=1 // loop_body
      %s21 = ssub.s32 %s16, 1
      %s22 = ssub.s32 %s16, 2
      %s23 = sadd.s32 %s16, 1
      %s24 = ssub.s32 %s16, %s23
      %p25 = scmp.eq.s32.totalorder %s24, 0
      %s27 = sadd.s32 %s26, 1
      %s28 = scalar_select %p25, %s26, %s27
      %p31 = pneg %p25
      %p32 = scmp.eq.s32.totalorder %s16, 3
      %p33 = por %p31, %p32
      %p34 = scmp.ne.s32.totalorder %s26, %s29
      %p35 = scmp.eq.s32.totalorder %s16, 0
      %p36 = por %p34, %p35
      %p37 = scmp.ne.s32.totalorder %s26, %s29
      %p38 = scmp.eq.s32.totalorder %s21, 3
      %p39 = por %p37, %p38
      %p40 = scmp.ne.s32.totalorder %s29, %s30
      %p41 = scmp.eq.s32.totalorder %s21, 0
      %p42 = por %p40, %p41
      %p43 = scmp.ne.s32.totalorder %s29, %s30
      %p44 = scmp.eq.s32.totalorder %s22, 3
      %p45 = por %p43, %p44
      %p47 = scmp.ne.s32.totalorder %s30, %s46
      %p48 = scmp.eq.s32.totalorder %s22, 0
      %p49 = por %p47, %p48
      %s51 = sadd.s32 %s50, 1
      %p54 = scmp.eq.s32.totalorder %s16, 3
      %p55 = scmp.ne.s32.totalorder %s50, %s52
      %p56 = scmp.eq.s32.totalorder %s16, 0
      %p57 = por %p55, %p56
      %p58 = scmp.ne.s32.totalorder %s50, %s52
      %p59 = scmp.eq.s32.totalorder %s21, 3
      %p60 = por %p58, %p59
      %p61 = scmp.ne.s32.totalorder %s52, %s53
      %p62 = scmp.eq.s32.totalorder %s21, 0
      %p63 = por %p61, %p62
      %p64 = scmp.ne.s32.totalorder %s52, %s53
      %p65 = scmp.eq.s32.totalorder %s22, 3
      %p66 = por %p64, %p65
      %p68 = scmp.ne.s32.totalorder %s53, %s67
      %p69 = scmp.eq.s32.totalorder %s22, 0
      %p70 = por %p68, %p69
      %s72 = sadd.s32 %s71, 1
      %p75 = scmp.eq.s32.totalorder %s16, 3
      %p76 = scmp.ne.s32.totalorder %s71, %s73
      %p77 = scmp.eq.s32.totalorder %s16, 0
      %p78 = por %p76, %p77
      %p79 = scmp.ne.s32.totalorder %s71, %s73
      %p80 = scmp.eq.s32.totalorder %s21, 3
      %p81 = por %p79, %p80
      %p82 = scmp.ne.s32.totalorder %s73, %s74
      %p83 = scmp.eq.s32.totalorder %s21, 0
      %p84 = por %p82, %p83
      %p85 = scmp.ne.s32.totalorder %s73, %s74
      %p86 = scmp.eq.s32.totalorder %s22, 3
      %p87 = por %p85, %p86
      %p89 = scmp.ne.s32.totalorder %s74, %s88
      %p90 = scmp.eq.s32.totalorder %s22, 0
      %p91 = por %p89, %p90
      %s93 = sadd.s32 %s92, 1
      %p96 = scmp.eq.s32.totalorder %s16, 3
      %p97 = scmp.ne.s32.totalorder %s92, %s94
      %p98 = scmp.eq.s32.totalorder %s16, 0
      %p99 = por %p97, %p98
      %p100 = scmp.ne.s32.totalorder %s92, %s94
      %p101 = scmp.eq.s32.totalorder %s21, 3
      %p102 = por %p100, %p101
      %p103 = scmp.ne.s32.totalorder %s94, %s95
      %p104 = scmp.eq.s32.totalorder %s21, 0
      %p105 = por %p103, %p104
      %p106 = scmp.ne.s32.totalorder %s94, %s95
      %p107 = scmp.eq.s32.totalorder %s22, 3
      %p108 = por %p106, %p107
      %p110 = scmp.ne.s32.totalorder %s95, %s109
      %p111 = scmp.eq.s32.totalorder %s22, 0
      %p112 = por %p110, %p111
      %s114 = sadd.s32 %s113, 1
      %p117 = scmp.eq.s32.totalorder %s16, 3
      %p118 = scmp.ne.s32.totalorder %s113, %s115
      %p119 = scmp.eq.s32.totalorder %s16, 0
      %p120 = por %p118, %p119
      %p121 = scmp.ne.s32.totalorder %s113, %s115
      %p122 = scmp.eq.s32.totalorder %s21, 3
      %p123 = por %p121, %p122
      %p124 = scmp.ne.s32.totalorder %s115, %s116
      %p125 = scmp.eq.s32.totalorder %s21, 0
      %p126 = por %p124, %p125
      %p127 = scmp.ne.s32.totalorder %s115, %s116
      %p128 = scmp.eq.s32.totalorder %s22, 3
      %p129 = por %p127, %p128
      %p131 = scmp.ne.s32.totalorder %s116, %s130
      %p132 = scmp.eq.s32.totalorder %s22, 0
      %p133 = por %p131, %p132
      %s135 = sadd.s32 %s134, 1
      %p138 = scmp.eq.s32.totalorder %s16, 3
      %p139 = scmp.ne.s32.totalorder %s134, %s136
      %p140 = scmp.eq.s32.totalorder %s16, 0
      %p141 = por %p139, %p140
      %p142 = scmp.ne.s32.totalorder %s134, %s136
      %p143 = scmp.eq.s32.totalorder %s21, 3
      %p144 = por %p142, %p143
      %p145 = scmp.ne.s32.totalorder %s136, %s137
      %p146 = scmp.eq.s32.totalorder %s21, 0
      %p147 = por %p145, %p146
      %p148 = scmp.ne.s32.totalorder %s136, %s137
      %p149 = scmp.eq.s32.totalorder %s22, 3
      %p150 = por %p148, %p149
      %p152 = scmp.ne.s32.totalorder %s137, %s151
      %p153 = scmp.eq.s32.totalorder %s22, 0
      %p154 = por %p152, %p153
      %s156 = sadd.s32 %s155, 1
      %p159 = scmp.eq.s32.totalorder %s16, 3
      %p160 = scmp.ne.s32.totalorder %s155, %s157
      %p161 = scmp.eq.s32.totalorder %s16, 0
      %p162 = por %p160, %p161
      %p163 = scmp.ne.s32.totalorder %s155, %s157
      %p164 = scmp.eq.s32.totalorder %s21, 3
      %p165 = por %p163, %p164
      %p166 = scmp.ne.s32.totalorder %s157, %s158
      %p167 = scmp.eq.s32.totalorder %s21, 0
      %p168 = por %p166, %p167
      %p169 = scmp.ne.s32.totalorder %s157, %s158
      %p170 = scmp.eq.s32.totalorder %s22, 3
      %p171 = por %p169, %p170
      %p173 = scmp.ne.s32.totalorder %s158, %s172
      %p174 = scmp.eq.s32.totalorder %s22, 0
      %p175 = por %p173, %p174
      %s176 = ssub.s32 %s16, %s23
      %p177 = scmp.eq.s32.totalorder %s176, 0
      %s179 = sadd.s32 %s178, 1
      %s180 = scalar_select %p177, %s178, %s179
      %p183 = pneg %p177
      %p184 = scmp.eq.s32.totalorder %s16, 3
      %p185 = por %p183, %p184
      %p186 = scmp.ne.s32.totalorder %s178, %s181
      %p187 = scmp.eq.s32.totalorder %s16, 0
      %p188 = por %p186, %p187
      %p189 = scmp.ne.s32.totalorder %s178, %s181
      %p190 = scmp.eq.s32.totalorder %s21, 3
      %p191 = por %p189, %p190
      %p192 = scmp.ne.s32.totalorder %s181, %s182
      %p193 = scmp.eq.s32.totalorder %s21, 0
      %p194 = por %p192, %p193
      %p195 = scmp.ne.s32.totalorder %s181, %s182
      %p196 = scmp.eq.s32.totalorder %s22, 3
      %p197 = por %p195, %p196
      %p199 = scmp.ne.s32.totalorder %s182, %s198
      %p200 = scmp.eq.s32.totalorder %s22, 0
      %p201 = por %p199, %p200
      %p202 = scmp.le.s32.totalorder 1, %s16
      %p203 = scmp.lt.s32.totalorder %s16, 5
      %p204 = pnand %p202, %p203
      %p205 = pneg %p204
      // Predicated region
      $region9: #{tpu_custom_call.1} parent=5 // pred_check
        _
      $region10: #{tpu_custom_call.1} parent=5 // pred_check_branch
        %207 = sbr.rel (%p204) target = $region12
      $region11: #{tpu_custom_call.1} parent=5 // pred_region
        %s208 = ssub.s32 %s16, 1
        // Predicated region
        $region13: #{tpu_custom_call.1} parent=11 // pred_check
          %p209 = pneg %p63
        $region14: #{tpu_custom_call.1} parent=11 // pred_check_branch
          %211 = sbr.rel (%p209) target = $region16
        $region15: #{tpu_custom_call.1} parent=11 // pred_region
          _
        $region16: #{tpu_custom_call.1} parent=11 // pred_fallthru
          _
        // Predicated region
        $region17: #{tpu_custom_call.1} parent=11 // pred_check
          %p212 = pneg %p84
        $region18: #{tpu_custom_call.1} parent=11 // pred_check_branch
          %214 = sbr.rel (%p212) target = $region20
        $region19: #{tpu_custom_call.1} parent=11 // pred_region
          _
        $region20: #{tpu_custom_call.1} parent=11 // pred_fallthru
          _
        // Predicated region
        $region21: #{tpu_custom_call.1} parent=11 // pred_check
          %p215 = pneg %p105
        $region22: #{tpu_custom_call.1} parent=11 // pred_check_branch
          %217 = sbr.rel (%p215) target = $region24
        $region23: #{tpu_custom_call.1} parent=11 // pred_region
          _
        $region24: #{tpu_custom_call.1} parent=11 // pred_fallthru
          _
        // Predicated region
        $region25: #{tpu_custom_call.1} parent=11 // pred_check
          %p218 = pneg %p126
        $region26: #{tpu_custom_call.1} parent=11 // pred_check_branch
          %220 = sbr.rel (%p218) target = $region28
        $region27: #{tpu_custom_call.1} parent=11 // pred_region
          _
        $region28: #{tpu_custom_call.1} parent=11 // pred_fallthru
          _
        // Predicated region
        $region29: #{tpu_custom_call.1} parent=11 // pred_check
          %p221 = pneg %p147
        $region30: #{tpu_custom_call.1} parent=11 // pred_check_branch
          %223 = sbr.rel (%p221) target = $region32
        $region31: #{tpu_custom_call.1} parent=11 // pred_region
          _
        $region32: #{tpu_custom_call.1} parent=11 // pred_fallthru
          _
        // Predicated region
        $region33: #{tpu_custom_call.1} parent=11 // pred_check
          %p224 = pneg %p168
        $region34: #{tpu_custom_call.1} parent=11 // pred_check_branch
          %226 = sbr.rel (%p224) target = $region36
        $region35: #{tpu_custom_call.1} parent=11 // pred_region
          _
        $region36: #{tpu_custom_call.1} parent=11 // pred_fallthru
          _
      $region12: #{tpu_custom_call.1} parent=5 // pred_fallthru
        _
      %p227 = scmp.lt.s32.totalorder %s16, 4
      // Predicated region
      $region37: #{tpu_custom_call.1} parent=5 // pred_check
        %p228 = pneg %p227
      $region38: #{tpu_custom_call.1} parent=5 // pred_check_branch
        %230 = sbr.rel (%p228) target = $region40
      $region39: #{tpu_custom_call.1} parent=5 // pred_region
        // Predicated region
        $region41: #{tpu_custom_call.1} parent=39 // pred_check
          %p231 = pneg %p36
        $region42: #{tpu_custom_call.1} parent=39 // pred_check_branch
          %233 = sbr.rel (%p231) target = $region44
        $region43: #{tpu_custom_call.1} parent=39 // pred_region
          %s234 = smul.u32 64, %s16
          %p235 = scmp.lt.s32.totalorder %s234, 255
          %s236 = scalar_select %p235, %s234, 255
          %s237 = smul.addr %s236, 8
          %s238 = scalar_lea.vmem %s0, %s237
          %s239 = smul.u32 64, %s16
        $region44: #{tpu_custom_call.1} parent=39 // pred_fallthru
          _
      $region40: #{tpu_custom_call.1} parent=5 // pred_fallthru
        _
      %p240 = scmp.le.s32.totalorder 1, %s16
      %p241 = scmp.lt.s32.totalorder %s16, 5
      %p242 = pnand %p240, %p241
      %p243 = pneg %p242
      // Predicated region
      $region45: #{tpu_custom_call.1} parent=5 // pred_check
        _
      $region46: #{tpu_custom_call.1} parent=5 // pred_check_branch
        %245 = sbr.rel (%p242) target = $region48
      $region47: #{tpu_custom_call.1} parent=5 // pred_region
        %s246 = ssub.s32 %s16, 1
        %s247 = smul.u32 64, %s21
        %p248 = scmp.lt.s32.totalorder %s247, 255
        %s249 = scalar_select %p248, %s247, 255
        %s250 = smul.addr %s249, 8
        %s251 = scalar_lea.vmem %s0, %s250
        %p252 = pneg %p42
        %p253 = pneg %p39
        %p254 = pneg %p63
        %p255 = pneg %p60
        %p256 = pneg %p84
        %p257 = pneg %p81
        %p258 = pneg %p105
        %p259 = pneg %p102
        %p260 = pneg %p126
        %p261 = pneg %p123
        %p262 = pneg %p147
        %p263 = pneg %p144
        %p264 = pneg %p168
        %p265 = pneg %p165
        %p266 = pneg %p194
        %p267 = pneg %p191
        %s268 = sand.u32 %s181, 1
        %s269 = scalar_lea.sflag [#allocation3], %s268
        %s270 = sand.u32 %s181, 1
        %s271 = smul.addr %s270, 256
        %s272 = scalar_lea.vmem [#allocation2], %s271
        %s273 = smul.u32 64, %s21
        %p274 = scmp.lt.s32.totalorder %s273, 255
        %s275 = scalar_select %p274, %s273, 255
        %s276 = smul.addr %s275, 8
        %s277 = scalar_lea.vmem %s0, %s276
        %s278 = smul.u32 64, %s21
        %s279 = smul.u32 64, %s21
        %v281 = vld [vmem:[%s277] sm:$0xff]
        %v282 = vld [vmem:[%s277 + $0x8] sm:$0xff]
        %v283 = vld [vmem:[%s277 + $0x10] sm:$0xff]
        %v284 = vld [vmem:[%s277 + $0x18] sm:$0xff]
        %v285 = vld [vmem:[%s277 + $0x20] sm:$0xff]
        %v286 = vld [vmem:[%s277 + $0x28] sm:$0xff]
        %v287 = vld [vmem:[%s277 + $0x30] sm:$0xff]
        %v288 = vld [vmem:[%s277 + $0x38] sm:$0xff]
        %v289 = vld [vmem:[%s277 + $0x40] sm:$0xff]
        %v290 = vld [vmem:[%s277 + $0x48] sm:$0xff]
        %v291 = vld [vmem:[%s277 + $0x50] sm:$0xff]
        %v292 = vld [vmem:[%s277 + $0x58] sm:$0xff]
        %v293 = vld [vmem:[%s277 + $0x60] sm:$0xff]
        %v294 = vld [vmem:[%s277 + $0x68] sm:$0xff]
        %v295 = vld [vmem:[%s277 + $0x70] sm:$0xff]
        %v296 = vld [vmem:[%s277 + $0x78] sm:$0xff]
        %v297 = vld [vmem:[%s277 + $0x80] sm:$0xff]
        %v298 = vld [vmem:[%s277 + $0x88] sm:$0xff]
        %v299 = vld [vmem:[%s277 + $0x90] sm:$0xff]
        %v300 = vld [vmem:[%s277 + $0x98] sm:$0xff]
        %v301 = vld [vmem:[%s277 + $0xa0] sm:$0xff]
        %v302 = vld [vmem:[%s277 + $0xa8] sm:$0xff]
        %v303 = vld [vmem:[%s277 + $0xb0] sm:$0xff]
        %v304 = vld [vmem:[%s277 + $0xb8] sm:$0xff]
        %v305 = vld [vmem:[%s277 + $0xc0] sm:$0xff]
        %v306 = vld [vmem:[%s277 + $0xc8] sm:$0xff]
        %v307 = vld [vmem:[%s277 + $0xd0] sm:$0xff]
        %v308 = vld [vmem:[%s277 + $0xd8] sm:$0xff]
        %v309 = vld [vmem:[%s277 + $0xe0] sm:$0xff]
        %v310 = vld [vmem:[%s277 + $0xe8] sm:$0xff]
        %v311 = vld [vmem:[%s277 + $0xf0] sm:$0xff]
        %v312 = vld [vmem:[%s277 + $0xf8] sm:$0xff]
        %v313 = vld [vmem:[%s277 + $0x100] sm:$0xff]
        %v314 = vld [vmem:[%s277 + $0x108] sm:$0xff]
        %v315 = vld [vmem:[%s277 + $0x110] sm:$0xff]
        %v316 = vld [vmem:[%s277 + $0x118] sm:$0xff]
        %v317 = vld [vmem:[%s277 + $0x120] sm:$0xff]
        %v318 = vld [vmem:[%s277 + $0x128] sm:$0xff]
        %v319 = vld [vmem:[%s277 + $0x130] sm:$0xff]
        %v320 = vld [vmem:[%s277 + $0x138] sm:$0xff]
        %v321 = vld [vmem:[%s277 + $0x140] sm:$0xff]
        %v322 = vld [vmem:[%s277 + $0x148] sm:$0xff]
        %v323 = vld [vmem:[%s277 + $0x150] sm:$0xff]
        %v324 = vld [vmem:[%s277 + $0x158] sm:$0xff]
        %v325 = vld [vmem:[%s277 + $0x160] sm:$0xff]
        %v326 = vld [vmem:[%s277 + $0x168] sm:$0xff]
        %v327 = vld [vmem:[%s277 + $0x170] sm:$0xff]
        %v328 = vld [vmem:[%s277 + $0x178] sm:$0xff]
        %v329 = vld [vmem:[%s277 + $0x180] sm:$0xff]
        %v330 = vld [vmem:[%s277 + $0x188] sm:$0xff]
        %v331 = vld [vmem:[%s277 + $0x190] sm:$0xff]
        %v332 = vld [vmem:[%s277 + $0x198] sm:$0xff]
        %v333 = vld [vmem:[%s277 + $0x1a0] sm:$0xff]
        %v334 = vld [vmem:[%s277 + $0x1a8] sm:$0xff]
        %v335 = vld [vmem:[%s277 + $0x1b0] sm:$0xff]
        %v336 = vld [vmem:[%s277 + $0x1b8] sm:$0xff]
        %v337 = vld [vmem:[%s277 + $0x1c0] sm:$0xff]
        %v338 = vld [vmem:[%s277 + $0x1c8] sm:$0xff]
        %v339 = vld [vmem:[%s277 + $0x1d0] sm:$0xff]
        %v340 = vld [vmem:[%s277 + $0x1d8] sm:$0xff]
        %v341 = vld [vmem:[%s277 + $0x1e0] sm:$0xff]
        %v342 = vld [vmem:[%s277 + $0x1e8] sm:$0xff]
        %v343 = vld [vmem:[%s277 + $0x1f0] sm:$0xff]
        %v344 = vld [vmem:[%s277 + $0x1f8] sm:$0xff]
        %v345 = vpack.c.bf16 %v282, %v281
        %v346 = vpack.c.bf16 %v284, %v283
        %v347 = vpack.c.bf16 %v286, %v285
        %v348 = vpack.c.bf16 %v288, %v287
        %v349 = vpack.c.bf16 %v290, %v289
        %v350 = vpack.c.bf16 %v292, %v291
        %v351 = vpack.c.bf16 %v294, %v293
        %v352 = vpack.c.bf16 %v296, %v295
        %v353 = vpack.c.bf16 %v298, %v297
        %v354 = vpack.c.bf16 %v300, %v299
        %v355 = vpack.c.bf16 %v302, %v301
        %v356 = vpack.c.bf16 %v304, %v303
        %v357 = vpack.c.bf16 %v306, %v305
        %v358 = vpack.c.bf16 %v308, %v307
        %v359 = vpack.c.bf16 %v310, %v309
        %v360 = vpack.c.bf16 %v312, %v311
        %v361 = vpack.c.bf16 %v314, %v313
        %v362 = vpack.c.bf16 %v316, %v315
        %v363 = vpack.c.bf16 %v318, %v317
        %v364 = vpack.c.bf16 %v320, %v319
        %v365 = vpack.c.bf16 %v322, %v321
        %v366 = vpack.c.bf16 %v324, %v323
        %v367 = vpack.c.bf16 %v326, %v325
        %v368 = vpack.c.bf16 %v328, %v327
        %v369 = vpack.c.bf16 %v330, %v329
        %v370 = vpack.c.bf16 %v332, %v331
        %v371 = vpack.c.bf16 %v334, %v333
        %v372 = vpack.c.bf16 %v336, %v335
        %v373 = vpack.c.bf16 %v338, %v337
        %v374 = vpack.c.bf16 %v340, %v339
        %v375 = vpack.c.bf16 %v342, %v341
        %v376 = vpack.c.bf16 %v344, %v343
        %v377 = vld [vmem:[%s1] sm:$0xf]
        %v378 = vld [vmem:[%s1 + $0x4] sm:$0xf]
        %v379 = vld [vmem:[%s1 + $0x8] sm:$0xf]
        %v380 = vld [vmem:[%s1 + $0xc] sm:$0xf]
        %v381 = vld [vmem:[%s2] sm:$0x1]
        %v383 = vperm.slane %v381, 0
        %v389 = vunpack.c.l.b16 %v377
        %v390 = vunpack.c.l.b16 %v378
        %v391 = vunpack.c.l.b16 %v379
        %v392 = vunpack.c.l.b16 %v380
        %v393 = vpack.c.b16 %v390, %v389
        %v394 = vpack.c.b16 %v392, %v391
        %vm397 = vcmask 261120
        %v399 = vsel %vm397, %v345, 0
        %v402 = vsel %vm397, %v346, 0
        %v405 = vsel %vm397, %v347, 0
        %v408 = vsel %vm397, %v348, 0
        %v411 = vsel %vm397, %v349, 0
        %v414 = vsel %vm397, %v350, 0
        %v417 = vsel %vm397, %v351, 0
        %v420 = vsel %vm397, %v352, 0
        %v423 = vsel %vm397, %v353, 0
        %v426 = vsel %vm397, %v354, 0
        %v429 = vsel %vm397, %v355, 0
        %v432 = vsel %vm397, %v356, 0
        %v435 = vsel %vm397, %v357, 0
        %v438 = vsel %vm397, %v358, 0
        %v441 = vsel %vm397, %v359, 0
        %v444 = vsel %vm397, %v360, 0
        %v447 = vsel %vm397, %v361, 0
        %v450 = vsel %vm397, %v362, 0
        %v453 = vsel %vm397, %v363, 0
        %v456 = vsel %vm397, %v364, 0
        %v459 = vsel %vm397, %v365, 0
        %v462 = vsel %vm397, %v366, 0
        %v465 = vsel %vm397, %v367, 0
        %v468 = vsel %vm397, %v368, 0
        %v471 = vsel %vm397, %v369, 0
        %v474 = vsel %vm397, %v370, 0
        %v477 = vsel %vm397, %v371, 0
        %v480 = vsel %vm397, %v372, 0
        %v483 = vsel %vm397, %v373, 0
        %v486 = vsel %vm397, %v374, 0
        %v489 = vsel %vm397, %v375, 0
        %v492 = vsel %vm397, %v376, 0
        %494 = vmatpush.bf16.msra.mxu0 0
        %495 = vmatpush.bf16.msra.mxu0 0
        %496 = vmatpush.bf16.msra.mxu0 0
        %497 = vmatpush.bf16.msra.mxu0 0
        %498 = vmatpush.bf16.msra.mxu0 0
        %499 = vmatpush.bf16.msra.mxu0 0
        %500 = vmatpush.bf16.msra.mxu0 %v394
        %501 = vmatpush.bf16.msra.mxu0 %v393
        %502 = vmatmul.bf16.gmra.mxu0 %v399
        %v503 = vpop.f32.mrf.mxu0
        %v504 = vadd.f32 %v383, %v503
        %v505 = vpop.f32.mrf.mxu0
        %v506 = vadd.f32 %v383, %v505
        %507 = vmatmul.bf16.gmra.mxu0 %v402
        %v508 = vpop.f32.mrf.mxu0
        %v509 = vadd.f32 %v383, %v508
        %v510 = vpop.f32.mrf.mxu0
        %v511 = vadd.f32 %v383, %v510
        %512 = vmatmul.bf16.gmra.mxu0 %v405
        %v513 = vpop.f32.mrf.mxu0
        %v514 = vadd.f32 %v383, %v513
        %v515 = vpop.f32.mrf.mxu0
        %v516 = vadd.f32 %v383, %v515
        %517 = vmatmul.bf16.gmra.mxu0 %v408
        %v518 = vpop.f32.mrf.mxu0
        %v519 = vadd.f32 %v383, %v518
        %v520 = vpop.f32.mrf.mxu0
        %v521 = vadd.f32 %v383, %v520
        %522 = vmatmul.bf16.gmra.mxu0 %v411
        %v523 = vpop.f32.mrf.mxu0
        %v524 = vadd.f32 %v383, %v523
        %v525 = vpop.f32.mrf.mxu0
        %v526 = vadd.f32 %v383, %v525
        %527 = vmatmul.bf16.gmra.mxu0 %v414
        %v528 = vpop.f32.mrf.mxu0
        %v529 = vadd.f32 %v383, %v528
        %v530 = vpop.f32.mrf.mxu0
        %v531 = vadd.f32 %v383, %v530
        %532 = vmatmul.bf16.gmra.mxu0 %v417
        %v533 = vpop.f32.mrf.mxu0
        %v534 = vadd.f32 %v383, %v533
        %v535 = vpop.f32.mrf.mxu0
        %v536 = vadd.f32 %v383, %v535
        %537 = vmatmul.bf16.gmra.mxu0 %v420
        %v538 = vpop.f32.mrf.mxu0
        %v539 = vadd.f32 %v383, %v538
        %v540 = vpop.f32.mrf.mxu0
        %v541 = vadd.f32 %v383, %v540
        %542 = vmatmul.bf16.gmra.mxu0 %v423
        %v543 = vpop.f32.mrf.mxu0
        %v544 = vadd.f32 %v383, %v543
        %v545 = vpop.f32.mrf.mxu0
        %v546 = vadd.f32 %v383, %v545
        %547 = vmatmul.bf16.gmra.mxu0 %v426
        %v548 = vpop.f32.mrf.mxu0
        %v549 = vadd.f32 %v383, %v548
        %v550 = vpop.f32.mrf.mxu0
        %v551 = vadd.f32 %v383, %v550
        %552 = vmatmul.bf16.gmra.mxu0 %v429
        %v553 = vpop.f32.mrf.mxu0
        %v554 = vadd.f32 %v383, %v553
        %v555 = vpop.f32.mrf.mxu0
        %v556 = vadd.f32 %v383, %v555
        %557 = vmatmul.bf16.gmra.mxu0 %v432
        %v558 = vpop.f32.mrf.mxu0
        %v559 = vadd.f32 %v383, %v558
        %v560 = vpop.f32.mrf.mxu0
        %v561 = vadd.f32 %v383, %v560
        %562 = vmatmul.bf16.gmra.mxu0 %v435
        %v563 = vpop.f32.mrf.mxu0
        %v564 = vadd.f32 %v383, %v563
        %v565 = vpop.f32.mrf.mxu0
        %v566 = vadd.f32 %v383, %v565
        %567 = vmatmul.bf16.gmra.mxu0 %v438
        %v568 = vpop.f32.mrf.mxu0
        %v569 = vadd.f32 %v383, %v568
        %v570 = vpop.f32.mrf.mxu0
        %v571 = vadd.f32 %v383, %v570
        %572 = vmatmul.bf16.gmra.mxu0 %v441
        %v573 = vpop.f32.mrf.mxu0
        %v574 = vadd.f32 %v383, %v573
        %v575 = vpop.f32.mrf.mxu0
        %v576 = vadd.f32 %v383, %v575
        %577 = vmatmul.bf16.gmra.mxu0 %v444
        %v578 = vpop.f32.mrf.mxu0
        %v579 = vadd.f32 %v383, %v578
        %v580 = vpop.f32.mrf.mxu0
        %v581 = vadd.f32 %v383, %v580
        %582 = vmatmul.bf16.gmra.mxu0 %v447
        %v583 = vpop.f32.mrf.mxu0
        %v584 = vadd.f32 %v383, %v583
        %v585 = vpop.f32.mrf.mxu0
        %v586 = vadd.f32 %v383, %v585
        %587 = vmatmul.bf16.gmra.mxu0 %v450
        %v588 = vpop.f32.mrf.mxu0
        %v589 = vadd.f32 %v383, %v588
        %v590 = vpop.f32.mrf.mxu0
        %v591 = vadd.f32 %v383, %v590
        %592 = vmatmul.bf16.gmra.mxu0 %v453
        %v593 = vpop.f32.mrf.mxu0
        %v594 = vadd.f32 %v383, %v593
        %v595 = vpop.f32.mrf.mxu0
        %v596 = vadd.f32 %v383, %v595
        %597 = vmatmul.bf16.gmra.mxu0 %v456
        %v598 = vpop.f32.mrf.mxu0
        %v599 = vadd.f32 %v383, %v598
        %v600 = vpop.f32.mrf.mxu0
        %v601 = vadd.f32 %v383, %v600
        %602 = vmatmul.bf16.gmra.mxu0 %v459
        %v603 = vpop.f32.mrf.mxu0
        %v604 = vadd.f32 %v383, %v603
        %v605 = vpop.f32.mrf.mxu0
        %v606 = vadd.f32 %v383, %v605
        %607 = vmatmul.bf16.gmra.mxu0 %v462
        %v608 = vpop.f32.mrf.mxu0
        %v609 = vadd.f32 %v383, %v608
        %v610 = vpop.f32.mrf.mxu0
        %v611 = vadd.f32 %v383, %v610
        %612 = vmatmul.bf16.gmra.mxu0 %v465
        %v613 = vpop.f32.mrf.mxu0
        %v614 = vadd.f32 %v383, %v613
        %v615 = vpop.f32.mrf.mxu0
        %v616 = vadd.f32 %v383, %v615
        %617 = vmatmul.bf16.gmra.mxu0 %v468
        %v618 = vpop.f32.mrf.mxu0
        %v619 = vadd.f32 %v383, %v618
        %v620 = vpop.f32.mrf.mxu0
        %v621 = vadd.f32 %v383, %v620
        %622 = vmatmul.bf16.gmra.mxu0 %v471
        %v623 = vpop.f32.mrf.mxu0
        %v624 = vadd.f32 %v383, %v623
        %v625 = vpop.f32.mrf.mxu0
        %v626 = vadd.f32 %v383, %v625
        %627 = vmatmul.bf16.gmra.mxu0 %v474
        %v628 = vpop.f32.mrf.mxu0
        %v629 = vadd.f32 %v383, %v628
        %v630 = vpop.f32.mrf.mxu0
        %v631 = vadd.f32 %v383, %v630
        %632 = vmatmul.bf16.gmra.mxu0 %v477
        %v633 = vpop.f32.mrf.mxu0
        %v634 = vadd.f32 %v383, %v633
        %v635 = vpop.f32.mrf.mxu0
        %v636 = vadd.f32 %v383, %v635
        %637 = vmatmul.bf16.gmra.mxu0 %v480
        %v638 = vpop.f32.mrf.mxu0
        %v639 = vadd.f32 %v383, %v638
        %v640 = vpop.f32.mrf.mxu0
        %v641 = vadd.f32 %v383, %v640
        %642 = vmatmul.bf16.gmra.mxu0 %v483
        %v643 = vpop.f32.mrf.mxu0
        %v644 = vadd.f32 %v383, %v643
        %v645 = vpop.f32.mrf.mxu0
        %v646 = vadd.f32 %v383, %v645
        %647 = vmatmul.bf16.gmra.mxu0 %v486
        %v648 = vpop.f32.mrf.mxu0
        %v649 = vadd.f32 %v383, %v648
        %v650 = vpop.f32.mrf.mxu0
        %v651 = vadd.f32 %v383, %v650
        %652 = vmatmul.bf16.gmra.mxu0 %v489
        %v653 = vpop.f32.mrf.mxu0
        %v654 = vadd.f32 %v383, %v653
        %v655 = vpop.f32.mrf.mxu0
        %v656 = vadd.f32 %v383, %v655
        %657 = vmatmul.bf16.gmra.mxu0 %v492
        %v658 = vpop.f32.mrf.mxu0
        %v659 = vadd.f32 %v383, %v658
        %v660 = vpop.f32.mrf.mxu0
        %v661 = vadd.f32 %v383, %v660
        %662 = vdwg.mxu0
        %v663 = vmax.f32 %v504, 0.0
        %v664 = vmax.f32 %v506, 0.0
        %v665 = vmax.f32 %v509, 0.0
        %v666 = vmax.f32 %v511, 0.0
        %v667 = vmax.f32 %v514, 0.0
        %v668 = vmax.f32 %v516, 0.0
        %v669 = vmax.f32 %v519, 0.0
        %v670 = vmax.f32 %v521, 0.0
        %v671 = vmax.f32 %v524, 0.0
        %v672 = vmax.f32 %v526, 0.0
        %v673 = vmax.f32 %v529, 0.0
        %v674 = vmax.f32 %v531, 0.0
        %v675 = vmax.f32 %v534, 0.0
        %v676 = vmax.f32 %v536, 0.0
        %v677 = vmax.f32 %v539, 0.0
        %v678 = vmax.f32 %v541, 0.0
        %v679 = vmax.f32 %v544, 0.0
        %v680 = vmax.f32 %v546, 0.0
        %v681 = vmax.f32 %v549, 0.0
        %v682 = vmax.f32 %v551, 0.0
        %v683 = vmax.f32 %v554, 0.0
        %v684 = vmax.f32 %v556, 0.0
        %v685 = vmax.f32 %v559, 0.0
        %v686 = vmax.f32 %v561, 0.0
        %v687 = vmax.f32 %v564, 0.0
        %v688 = vmax.f32 %v566, 0.0
        %v689 = vmax.f32 %v569, 0.0
        %v690 = vmax.f32 %v571, 0.0
        %v691 = vmax.f32 %v574, 0.0
        %v692 = vmax.f32 %v576, 0.0
        %v693 = vmax.f32 %v579, 0.0
        %v694 = vmax.f32 %v581, 0.0
        %v695 = vmax.f32 %v584, 0.0
        %v696 = vmax.f32 %v586, 0.0
        %v697 = vmax.f32 %v589, 0.0
        %v698 = vmax.f32 %v591, 0.0
        %v699 = vmax.f32 %v594, 0.0
        %v700 = vmax.f32 %v596, 0.0
        %v701 = vmax.f32 %v599, 0.0
        %v702 = vmax.f32 %v601, 0.0
        %v703 = vmax.f32 %v604, 0.0
        %v704 = vmax.f32 %v606, 0.0
        %v705 = vmax.f32 %v609, 0.0
        %v706 = vmax.f32 %v611, 0.0
        %v707 = vmax.f32 %v614, 0.0
        %v708 = vmax.f32 %v616, 0.0
        %v709 = vmax.f32 %v619, 0.0
        %v710 = vmax.f32 %v621, 0.0
        %v711 = vmax.f32 %v624, 0.0
        %v712 = vmax.f32 %v626, 0.0
        %v713 = vmax.f32 %v629, 0.0
        %v714 = vmax.f32 %v631, 0.0
        %v715 = vmax.f32 %v634, 0.0
        %v716 = vmax.f32 %v636, 0.0
        %v717 = vmax.f32 %v639, 0.0
        %v718 = vmax.f32 %v641, 0.0
        %v719 = vmax.f32 %v644, 0.0
        %v720 = vmax.f32 %v646, 0.0
        %v721 = vmax.f32 %v649, 0.0
        %v722 = vmax.f32 %v651, 0.0
        %v723 = vmax.f32 %v654, 0.0
        %v724 = vmax.f32 %v656, 0.0
        %v725 = vmax.f32 %v659, 0.0
        %v726 = vmax.f32 %v661, 0.0
        %v727 = vpack.c.bf16 %v664, %v663
        %v728 = vpack.c.bf16 %v666, %v665
        %v729 = vpack.c.bf16 %v668, %v667
        %v730 = vpack.c.bf16 %v670, %v669
        %v731 = vpack.c.bf16 %v672, %v671
        %v732 = vpack.c.bf16 %v674, %v673
        %v733 = vpack.c.bf16 %v676, %v675
        %v734 = vpack.c.bf16 %v678, %v677
        %v735 = vpack.c.bf16 %v680, %v679
        %v736 = vpack.c.bf16 %v682, %v681
        %v737 = vpack.c.bf16 %v684, %v683
        %v738 = vpack.c.bf16 %v686, %v685
        %v739 = vpack.c.bf16 %v688, %v687
        %v740 = vpack.c.bf16 %v690, %v689
        %v741 = vpack.c.bf16 %v692, %v691
        %v742 = vpack.c.bf16 %v694, %v693
        %v743 = vpack.c.bf16 %v696, %v695
        %v744 = vpack.c.bf16 %v698, %v697
        %v745 = vpack.c.bf16 %v700, %v699
        %v746 = vpack.c.bf16 %v702, %v701
        %v747 = vpack.c.bf16 %v704, %v703
        %v748 = vpack.c.bf16 %v706, %v705
        %v749 = vpack.c.bf16 %v708, %v707
        %v750 = vpack.c.bf16 %v710, %v709
        %v751 = vpack.c.bf16 %v712, %v711
        %v752 = vpack.c.bf16 %v714, %v713
        %v753 = vpack.c.bf16 %v716, %v715
        %v754 = vpack.c.bf16 %v718, %v717
        %v755 = vpack.c.bf16 %v720, %v719
        %v756 = vpack.c.bf16 %v722, %v721
        %v757 = vpack.c.bf16 %v724, %v723
        %v758 = vpack.c.bf16 %v726, %v725
        %v759 = vld [vmem:[%s3] sm:$0xf]
        %v760 = vld [vmem:[%s3 + $0x4] sm:$0xf]
        %v761 = vld [vmem:[%s3 + $0x8] sm:$0xf]
        %v762 = vld [vmem:[%s3 + $0xc] sm:$0xf]
        %v763 = vld [vmem:[%s3 + $0x10] sm:$0xf]
        %v764 = vld [vmem:[%s3 + $0x14] sm:$0xf]
        %v765 = vld [vmem:[%s3 + $0x18] sm:$0xf]
        %v766 = vld [vmem:[%s3 + $0x1c] sm:$0xf]
        %v767 = vld [vmem:[%s3 + $0x20] sm:$0xf]
        %v768 = vld [vmem:[%s3 + $0x24] sm:$0xf]
        %v769 = vld [vmem:[%s3 + $0x28] sm:$0xf]
        %v770 = vld [vmem:[%s3 + $0x2c] sm:$0xf]
        %v771 = vld [vmem:[%s3 + $0x30] sm:$0xf]
        %v772 = vld [vmem:[%s3 + $0x34] sm:$0xf]
        %v773 = vld [vmem:[%s3 + $0x38] sm:$0xf]
        %v774 = vld [vmem:[%s3 + $0x3c] sm:$0xf]
        %v775 = vld [vmem:[%s4] sm:$0x1]
        %v777 = vperm.slane %v775, 0
        %v795 = vunpack.c.l.b16 %v759
        %v796 = vunpack.c.l.b16 %v760
        %v797 = vunpack.c.l.b16 %v761
        %v798 = vunpack.c.l.b16 %v762
        %v799 = vunpack.c.l.b16 %v763
        %v800 = vunpack.c.l.b16 %v764
        %v801 = vunpack.c.l.b16 %v765
        %v802 = vunpack.c.l.b16 %v766
        %v803 = vunpack.c.l.b16 %v767
        %v804 = vunpack.c.l.b16 %v768
        %v805 = vunpack.c.l.b16 %v769
        %v806 = vunpack.c.l.b16 %v770
        %v807 = vunpack.c.l.b16 %v771
        %v808 = vunpack.c.l.b16 %v772
        %v809 = vunpack.c.l.b16 %v773
        %v810 = vunpack.c.l.b16 %v774
        %v811 = vpack.c.b16 %v796, %v795
        %v812 = vpack.c.b16 %v798, %v797
        %v813 = vpack.c.b16 %v800, %v799
        %v814 = vpack.c.b16 %v802, %v801
        %v815 = vpack.c.b16 %v804, %v803
        %v816 = vpack.c.b16 %v806, %v805
        %v817 = vpack.c.b16 %v808, %v807
        %v818 = vpack.c.b16 %v810, %v809
        %827 = vmatpush.bf16.msra.mxu0 %v818
        %828 = vmatpush.bf16.msra.mxu0 %v817
        %829 = vmatpush.bf16.msra.mxu0 %v816
        %830 = vmatpush.bf16.msra.mxu0 %v815
        %831 = vmatpush.bf16.msra.mxu0 %v814
        %832 = vmatpush.bf16.msra.mxu0 %v813
        %833 = vmatpush.bf16.msra.mxu0 %v812
        %834 = vmatpush.bf16.msra.mxu0 %v811
        %835 = vmatmul.bf16.gmra.mxu0 %v727
        %v836 = vpop.f32.mrf.mxu0
        %v837 = vadd.f32 %v777, %v836
        %v838 = vpop.f32.mrf.mxu0
        %v839 = vadd.f32 %v777, %v838
        %840 = vmatmul.bf16.gmra.mxu0 %v728
        %v841 = vpop.f32.mrf.mxu0
        %v842 = vadd.f32 %v777, %v841
        %v843 = vpop.f32.mrf.mxu0
        %v844 = vadd.f32 %v777, %v843
        %845 = vmatmul.bf16.gmra.mxu0 %v729
        %v846 = vpop.f32.mrf.mxu0
        %v847 = vadd.f32 %v777, %v846
        %v848 = vpop.f32.mrf.mxu0
        %v849 = vadd.f32 %v777, %v848
        %850 = vmatmul.bf16.gmra.mxu0 %v730
        %v851 = vpop.f32.mrf.mxu0
        %v852 = vadd.f32 %v777, %v851
        %v853 = vpop.f32.mrf.mxu0
        %v854 = vadd.f32 %v777, %v853
        %855 = vmatmul.bf16.gmra.mxu0 %v731
        %v856 = vpop.f32.mrf.mxu0
        %v857 = vadd.f32 %v777, %v856
        %v858 = vpop.f32.mrf.mxu0
        %v859 = vadd.f32 %v777, %v858
        %860 = vmatmul.bf16.gmra.mxu0 %v732
        %v861 = vpop.f32.mrf.mxu0
        %v862 = vadd.f32 %v777, %v861
        %v863 = vpop.f32.mrf.mxu0
        %v864 = vadd.f32 %v777, %v863
        %865 = vmatmul.bf16.gmra.mxu0 %v733
        %v866 = vpop.f32.mrf.mxu0
        %v867 = vadd.f32 %v777, %v866
        %v868 = vpop.f32.mrf.mxu0
        %v869 = vadd.f32 %v777, %v868
        %870 = vmatmul.bf16.gmra.mxu0 %v734
        %v871 = vpop.f32.mrf.mxu0
        %v872 = vadd.f32 %v777, %v871
        %v873 = vpop.f32.mrf.mxu0
        %v874 = vadd.f32 %v777, %v873
        %875 = vmatmul.bf16.gmra.mxu0 %v735
        %v876 = vpop.f32.mrf.mxu0
        %v877 = vadd.f32 %v777, %v876
        %v878 = vpop.f32.mrf.mxu0
        %v879 = vadd.f32 %v777, %v878
        %880 = vmatmul.bf16.gmra.mxu0 %v736
        %v881 = vpop.f32.mrf.mxu0
        %v882 = vadd.f32 %v777, %v881
        %v883 = vpop.f32.mrf.mxu0
        %v884 = vadd.f32 %v777, %v883
        %885 = vmatmul.bf16.gmra.mxu0 %v737
        %v886 = vpop.f32.mrf.mxu0
        %v887 = vadd.f32 %v777, %v886
        %v888 = vpop.f32.mrf.mxu0
        %v889 = vadd.f32 %v777, %v888
        %890 = vmatmul.bf16.gmra.mxu0 %v738
        %v891 = vpop.f32.mrf.mxu0
        %v892 = vadd.f32 %v777, %v891
        %v893 = vpop.f32.mrf.mxu0
        %v894 = vadd.f32 %v777, %v893
        %895 = vmatmul.bf16.gmra.mxu0 %v739
        %v896 = vpop.f32.mrf.mxu0
        %v897 = vadd.f32 %v777, %v896
        %v898 = vpop.f32.mrf.mxu0
        %v899 = vadd.f32 %v777, %v898
        %900 = vmatmul.bf16.gmra.mxu0 %v740
        %v901 = vpop.f32.mrf.mxu0
        %v902 = vadd.f32 %v777, %v901
        %v903 = vpop.f32.mrf.mxu0
        %v904 = vadd.f32 %v777, %v903
        %905 = vmatmul.bf16.gmra.mxu0 %v741
        %v906 = vpop.f32.mrf.mxu0
        %v907 = vadd.f32 %v777, %v906
        %v908 = vpop.f32.mrf.mxu0
        %v909 = vadd.f32 %v777, %v908
        %910 = vmatmul.bf16.gmra.mxu0 %v742
        %v911 = vpop.f32.mrf.mxu0
        %v912 = vadd.f32 %v777, %v911
        %v913 = vpop.f32.mrf.mxu0
        %v914 = vadd.f32 %v777, %v913
        %915 = vmatmul.bf16.gmra.mxu0 %v743
        %v916 = vpop.f32.mrf.mxu0
        %v917 = vadd.f32 %v777, %v916
        %v918 = vpop.f32.mrf.mxu0
        %v919 = vadd.f32 %v777, %v918
        %920 = vmatmul.bf16.gmra.mxu0 %v744
        %v921 = vpop.f32.mrf.mxu0
        %v922 = vadd.f32 %v777, %v921
        %v923 = vpop.f32.mrf.mxu0
        %v924 = vadd.f32 %v777, %v923
        %925 = vmatmul.bf16.gmra.mxu0 %v745
        %v926 = vpop.f32.mrf.mxu0
        %v927 = vadd.f32 %v777, %v926
        %v928 = vpop.f32.mrf.mxu0
        %v929 = vadd.f32 %v777, %v928
        %930 = vmatmul.bf16.gmra.mxu0 %v746
        %v931 = vpop.f32.mrf.mxu0
        %v932 = vadd.f32 %v777, %v931
        %v933 = vpop.f32.mrf.mxu0
        %v934 = vadd.f32 %v777, %v933
        %935 = vmatmul.bf16.gmra.mxu0 %v747
        %v936 = vpop.f32.mrf.mxu0
        %v937 = vadd.f32 %v777, %v936
        %v938 = vpop.f32.mrf.mxu0
        %v939 = vadd.f32 %v777, %v938
        %940 = vmatmul.bf16.gmra.mxu0 %v748
        %v941 = vpop.f32.mrf.mxu0
        %v942 = vadd.f32 %v777, %v941
        %v943 = vpop.f32.mrf.mxu0
        %v944 = vadd.f32 %v777, %v943
        %945 = vmatmul.bf16.gmra.mxu0 %v749
        %v946 = vpop.f32.mrf.mxu0
        %v947 = vadd.f32 %v777, %v946
        %v948 = vpop.f32.mrf.mxu0
        %v949 = vadd.f32 %v777, %v948
        %950 = vmatmul.bf16.gmra.mxu0 %v750
        %v951 = vpop.f32.mrf.mxu0
        %v952 = vadd.f32 %v777, %v951
        %v953 = vpop.f32.mrf.mxu0
        %v954 = vadd.f32 %v777, %v953
        %955 = vmatmul.bf16.gmra.mxu0 %v751
        %v956 = vpop.f32.mrf.mxu0
        %v957 = vadd.f32 %v777, %v956
        %v958 = vpop.f32.mrf.mxu0
        %v959 = vadd.f32 %v777, %v958
        %960 = vmatmul.bf16.gmra.mxu0 %v752
        %v961 = vpop.f32.mrf.mxu0
        %v962 = vadd.f32 %v777, %v961
        %v963 = vpop.f32.mrf.mxu0
        %v964 = vadd.f32 %v777, %v963
        %965 = vmatmul.bf16.gmra.mxu0 %v753
        %v966 = vpop.f32.mrf.mxu0
        %v967 = vadd.f32 %v777, %v966
        %v968 = vpop.f32.mrf.mxu0
        %v969 = vadd.f32 %v777, %v968
        %970 = vmatmul.bf16.gmra.mxu0 %v754
        %v971 = vpop.f32.mrf.mxu0
        %v972 = vadd.f32 %v777, %v971
        %v973 = vpop.f32.mrf.mxu0
        %v974 = vadd.f32 %v777, %v973
        %975 = vmatmul.bf16.gmra.mxu0 %v755
        %v976 = vpop.f32.mrf.mxu0
        %v977 = vadd.f32 %v777, %v976
        %v978 = vpop.f32.mrf.mxu0
        %v979 = vadd.f32 %v777, %v978
        %980 = vmatmul.bf16.gmra.mxu0 %v756
        %v981 = vpop.f32.mrf.mxu0
        %v982 = vadd.f32 %v777, %v981
        %v983 = vpop.f32.mrf.mxu0
        %v984 = vadd.f32 %v777, %v983
        %985 = vmatmul.bf16.gmra.mxu0 %v757
        %v986 = vpop.f32.mrf.mxu0
        %v987 = vadd.f32 %v777, %v986
        %v988 = vpop.f32.mrf.mxu0
        %v989 = vadd.f32 %v777, %v988
        %990 = vmatmul.bf16.gmra.mxu0 %v758
        %v991 = vpop.f32.mrf.mxu0
        %v992 = vadd.f32 %v777, %v991
        %v993 = vpop.f32.mrf.mxu0
        %v994 = vadd.f32 %v777, %v993
        %995 = vdwg.mxu0
        %v996 = vmax.f32 %v837, 0.0
        %v997 = vmax.f32 %v839, 0.0
        %v998 = vmax.f32 %v842, 0.0
        %v999 = vmax.f32 %v844, 0.0
        %v1000 = vmax.f32 %v847, 0.0
        %v1001 = vmax.f32 %v849, 0.0
        %v1002 = vmax.f32 %v852, 0.0
        %v1003 = vmax.f32 %v854, 0.0
        %v1004 = vmax.f32 %v857, 0.0
        %v1005 = vmax.f32 %v859, 0.0
        %v1006 = vmax.f32 %v862, 0.0
        %v1007 = vmax.f32 %v864, 0.0
        %v1008 = vmax.f32 %v867, 0.0
        %v1009 = vmax.f32 %v869, 0.0
        %v1010 = vmax.f32 %v872, 0.0
        %v1011 = vmax.f32 %v874, 0.0
        %v1012 = vmax.f32 %v877, 0.0
        %v1013 = vmax.f32 %v879, 0.0
        %v1014 = vmax.f32 %v882, 0.0
        %v1015 = vmax.f32 %v884, 0.0
        %v1016 = vmax.f32 %v887, 0.0
        %v1017 = vmax.f32 %v889, 0.0
        %v1018 = vmax.f32 %v892, 0.0
        %v1019 = vmax.f32 %v894, 0.0
        %v1020 = vmax.f32 %v897, 0.0
        %v1021 = vmax.f32 %v899, 0.0
        %v1022 = vmax.f32 %v902, 0.0
        %v1023 = vmax.f32 %v904, 0.0
        %v1024 = vmax.f32 %v907, 0.0
        %v1025 = vmax.f32 %v909, 0.0
        %v1026 = vmax.f32 %v912, 0.0
        %v1027 = vmax.f32 %v914, 0.0
        %v1028 = vmax.f32 %v917, 0.0
        %v1029 = vmax.f32 %v919, 0.0
        %v1030 = vmax.f32 %v922, 0.0
        %v1031 = vmax.f32 %v924, 0.0
        %v1032 = vmax.f32 %v927, 0.0
        %v1033 = vmax.f32 %v929, 0.0
        %v1034 = vmax.f32 %v932, 0.0
        %v1035 = vmax.f32 %v934, 0.0
        %v1036 = vmax.f32 %v937, 0.0
        %v1037 = vmax.f32 %v939, 0.0
        %v1038 = vmax.f32 %v942, 0.0
        %v1039 = vmax.f32 %v944, 0.0
        %v1040 = vmax.f32 %v947, 0.0
        %v1041 = vmax.f32 %v949, 0.0
        %v1042 = vmax.f32 %v952, 0.0
        %v1043 = vmax.f32 %v954, 0.0
        %v1044 = vmax.f32 %v957, 0.0
        %v1045 = vmax.f32 %v959, 0.0
        %v1046 = vmax.f32 %v962, 0.0
        %v1047 = vmax.f32 %v964, 0.0
        %v1048 = vmax.f32 %v967, 0.0
        %v1049 = vmax.f32 %v969, 0.0
        %v1050 = vmax.f32 %v972, 0.0
        %v1051 = vmax.f32 %v974, 0.0
        %v1052 = vmax.f32 %v977, 0.0
        %v1053 = vmax.f32 %v979, 0.0
        %v1054 = vmax.f32 %v982, 0.0
        %v1055 = vmax.f32 %v984, 0.0
        %v1056 = vmax.f32 %v987, 0.0
        %v1057 = vmax.f32 %v989, 0.0
        %v1058 = vmax.f32 %v992, 0.0
        %v1059 = vmax.f32 %v994, 0.0
        %v1060 = vpack.c.bf16 %v997, %v996
        %v1061 = vpack.c.bf16 %v999, %v998
        %v1062 = vpack.c.bf16 %v1001, %v1000
        %v1063 = vpack.c.bf16 %v1003, %v1002
        %v1064 = vpack.c.bf16 %v1005, %v1004
        %v1065 = vpack.c.bf16 %v1007, %v1006
        %v1066 = vpack.c.bf16 %v1009, %v1008
        %v1067 = vpack.c.bf16 %v1011, %v1010
        %v1068 = vpack.c.bf16 %v1013, %v1012
        %v1069 = vpack.c.bf16 %v1015, %v1014
        %v1070 = vpack.c.bf16 %v1017, %v1016
        %v1071 = vpack.c.bf16 %v1019, %v1018
        %v1072 = vpack.c.bf16 %v1021, %v1020
        %v1073 = vpack.c.bf16 %v1023, %v1022
        %v1074 = vpack.c.bf16 %v1025, %v1024
        %v1075 = vpack.c.bf16 %v1027, %v1026
        %v1076 = vpack.c.bf16 %v1029, %v1028
        %v1077 = vpack.c.bf16 %v1031, %v1030
        %v1078 = vpack.c.bf16 %v1033, %v1032
        %v1079 = vpack.c.bf16 %v1035, %v1034
        %v1080 = vpack.c.bf16 %v1037, %v1036
        %v1081 = vpack.c.bf16 %v1039, %v1038
        %v1082 = vpack.c.bf16 %v1041, %v1040
        %v1083 = vpack.c.bf16 %v1043, %v1042
        %v1084 = vpack.c.bf16 %v1045, %v1044
        %v1085 = vpack.c.bf16 %v1047, %v1046
        %v1086 = vpack.c.bf16 %v1049, %v1048
        %v1087 = vpack.c.bf16 %v1051, %v1050
        %v1088 = vpack.c.bf16 %v1053, %v1052
        %v1089 = vpack.c.bf16 %v1055, %v1054
        %v1090 = vpack.c.bf16 %v1057, %v1056
        %v1091 = vpack.c.bf16 %v1059, %v1058
        %v1092 = vld [vmem:[%s5] sm:$0xf]
        %v1093 = vld [vmem:[%s5 + $0x4] sm:$0xf]
        %v1094 = vld [vmem:[%s5 + $0x8] sm:$0xf]
        %v1095 = vld [vmem:[%s5 + $0xc] sm:$0xf]
        %v1096 = vld [vmem:[%s5 + $0x10] sm:$0xf]
        %v1097 = vld [vmem:[%s5 + $0x14] sm:$0xf]
        %v1098 = vld [vmem:[%s5 + $0x18] sm:$0xf]
        %v1099 = vld [vmem:[%s5 + $0x1c] sm:$0xf]
        %v1100 = vld [vmem:[%s5 + $0x20] sm:$0xf]
        %v1101 = vld [vmem:[%s5 + $0x24] sm:$0xf]
        %v1102 = vld [vmem:[%s5 + $0x28] sm:$0xf]
        %v1103 = vld [vmem:[%s5 + $0x2c] sm:$0xf]
        %v1104 = vld [vmem:[%s5 + $0x30] sm:$0xf]
        %v1105 = vld [vmem:[%s5 + $0x34] sm:$0xf]
        %v1106 = vld [vmem:[%s5 + $0x38] sm:$0xf]
        %v1107 = vld [vmem:[%s5 + $0x3c] sm:$0xf]
        %v1108 = vld [vmem:[%s6] sm:$0x1]
        %v1110 = vperm.slane %v1108, 0
        %v1128 = vunpack.c.l.b16 %v1092
        %v1129 = vunpack.c.l.b16 %v1093
        %v1130 = vunpack.c.l.b16 %v1094
        %v1131 = vunpack.c.l.b16 %v1095
        %v1132 = vunpack.c.l.b16 %v1096
        %v1133 = vunpack.c.l.b16 %v1097
        %v1134 = vunpack.c.l.b16 %v1098
        %v1135 = vunpack.c.l.b16 %v1099
        %v1136 = vunpack.c.l.b16 %v1100
        %v1137 = vunpack.c.l.b16 %v1101
        %v1138 = vunpack.c.l.b16 %v1102
        %v1139 = vunpack.c.l.b16 %v1103
        %v1140 = vunpack.c.l.b16 %v1104
        %v1141 = vunpack.c.l.b16 %v1105
        %v1142 = vunpack.c.l.b16 %v1106
        %v1143 = vunpack.c.l.b16 %v1107
        %v1144 = vpack.c.b16 %v1129, %v1128
        %v1145 = vpack.c.b16 %v1131, %v1130
        %v1146 = vpack.c.b16 %v1133, %v1132
        %v1147 = vpack.c.b16 %v1135, %v1134
        %v1148 = vpack.c.b16 %v1137, %v1136
        %v1149 = vpack.c.b16 %v1139, %v1138
        %v1150 = vpack.c.b16 %v1141, %v1140
        %v1151 = vpack.c.b16 %v1143, %v1142
        %1160 = vmatpush.bf16.msra.mxu0 %v1151
        %1161 = vmatpush.bf16.msra.mxu0 %v1150
        %1162 = vmatpush.bf16.msra.mxu0 %v1149
        %1163 = vmatpush.bf16.msra.mxu0 %v1148
        %1164 = vmatpush.bf16.msra.mxu0 %v1147
        %1165 = vmatpush.bf16.msra.mxu0 %v1146
        %1166 = vmatpush.bf16.msra.mxu0 %v1145
        %1167 = vmatpush.bf16.msra.mxu0 %v1144
        %1168 = vmatmul.bf16.gmra.mxu0 %v1060
        %v1169 = vpop.f32.mrf.mxu0
        %v1170 = vadd.f32 %v1110, %v1169
        %v1171 = vpop.f32.mrf.mxu0
        %v1172 = vadd.f32 %v1110, %v1171
        %1173 = vmatmul.bf16.gmra.mxu0 %v1061
        %v1174 = vpop.f32.mrf.mxu0
        %v1175 = vadd.f32 %v1110, %v1174
        %v1176 = vpop.f32.mrf.mxu0
        %v1177 = vadd.f32 %v1110, %v1176
        %1178 = vmatmul.bf16.gmra.mxu0 %v1062
        %v1179 = vpop.f32.mrf.mxu0
        %v1180 = vadd.f32 %v1110, %v1179
        %v1181 = vpop.f32.mrf.mxu0
        %v1182 = vadd.f32 %v1110, %v1181
        %1183 = vmatmul.bf16.gmra.mxu0 %v1063
        %v1184 = vpop.f32.mrf.mxu0
        %v1185 = vadd.f32 %v1110, %v1184
        %v1186 = vpop.f32.mrf.mxu0
        %v1187 = vadd.f32 %v1110, %v1186
        %1188 = vmatmul.bf16.gmra.mxu0 %v1064
        %v1189 = vpop.f32.mrf.mxu0
        %v1190 = vadd.f32 %v1110, %v1189
        %v1191 = vpop.f32.mrf.mxu0
        %v1192 = vadd.f32 %v1110, %v1191
        %1193 = vmatmul.bf16.gmra.mxu0 %v1065
        %v1194 = vpop.f32.mrf.mxu0
        %v1195 = vadd.f32 %v1110, %v1194
        %v1196 = vpop.f32.mrf.mxu0
        %v1197 = vadd.f32 %v1110, %v1196
        %1198 = vmatmul.bf16.gmra.mxu0 %v1066
        %v1199 = vpop.f32.mrf.mxu0
        %v1200 = vadd.f32 %v1110, %v1199
        %v1201 = vpop.f32.mrf.mxu0
        %v1202 = vadd.f32 %v1110, %v1201
        %1203 = vmatmul.bf16.gmra.mxu0 %v1067
        %v1204 = vpop.f32.mrf.mxu0
        %v1205 = vadd.f32 %v1110, %v1204
        %v1206 = vpop.f32.mrf.mxu0
        %v1207 = vadd.f32 %v1110, %v1206
        %1208 = vmatmul.bf16.gmra.mxu0 %v1068
        %v1209 = vpop.f32.mrf.mxu0
        %v1210 = vadd.f32 %v1110, %v1209
        %v1211 = vpop.f32.mrf.mxu0
        %v1212 = vadd.f32 %v1110, %v1211
        %1213 = vmatmul.bf16.gmra.mxu0 %v1069
        %v1214 = vpop.f32.mrf.mxu0
        %v1215 = vadd.f32 %v1110, %v1214
        %v1216 = vpop.f32.mrf.mxu0
        %v1217 = vadd.f32 %v1110, %v1216
        %1218 = vmatmul.bf16.gmra.mxu0 %v1070
        %v1219 = vpop.f32.mrf.mxu0
        %v1220 = vadd.f32 %v1110, %v1219
        %v1221 = vpop.f32.mrf.mxu0
        %v1222 = vadd.f32 %v1110, %v1221
        %1223 = vmatmul.bf16.gmra.mxu0 %v1071
        %v1224 = vpop.f32.mrf.mxu0
        %v1225 = vadd.f32 %v1110, %v1224
        %v1226 = vpop.f32.mrf.mxu0
        %v1227 = vadd.f32 %v1110, %v1226
        %1228 = vmatmul.bf16.gmra.mxu0 %v1072
        %v1229 = vpop.f32.mrf.mxu0
        %v1230 = vadd.f32 %v1110, %v1229
        %v1231 = vpop.f32.mrf.mxu0
        %v1232 = vadd.f32 %v1110, %v1231
        %1233 = vmatmul.bf16.gmra.mxu0 %v1073
        %v1234 = vpop.f32.mrf.mxu0
        %v1235 = vadd.f32 %v1110, %v1234
        %v1236 = vpop.f32.mrf.mxu0
        %v1237 = vadd.f32 %v1110, %v1236
        %1238 = vmatmul.bf16.gmra.mxu0 %v1074
        %v1239 = vpop.f32.mrf.mxu0
        %v1240 = vadd.f32 %v1110, %v1239
        %v1241 = vpop.f32.mrf.mxu0
        %v1242 = vadd.f32 %v1110, %v1241
        %1243 = vmatmul.bf16.gmra.mxu0 %v1075
        %v1244 = vpop.f32.mrf.mxu0
        %v1245 = vadd.f32 %v1110, %v1244
        %v1246 = vpop.f32.mrf.mxu0
        %v1247 = vadd.f32 %v1110, %v1246
        %1248 = vmatmul.bf16.gmra.mxu0 %v1076
        %v1249 = vpop.f32.mrf.mxu0
        %v1250 = vadd.f32 %v1110, %v1249
        %v1251 = vpop.f32.mrf.mxu0
        %v1252 = vadd.f32 %v1110, %v1251
        %1253 = vmatmul.bf16.gmra.mxu0 %v1077
        %v1254 = vpop.f32.mrf.mxu0
        %v1255 = vadd.f32 %v1110, %v1254
        %v1256 = vpop.f32.mrf.mxu0
        %v1257 = vadd.f32 %v1110, %v1256
        %1258 = vmatmul.bf16.gmra.mxu0 %v1078
        %v1259 = vpop.f32.mrf.mxu0
        %v1260 = vadd.f32 %v1110, %v1259
        %v1261 = vpop.f32.mrf.mxu0
        %v1262 = vadd.f32 %v1110, %v1261
        %1263 = vmatmul.bf16.gmra.mxu0 %v1079
        %v1264 = vpop.f32.mrf.mxu0
        %v1265 = vadd.f32 %v1110, %v1264
        %v1266 = vpop.f32.mrf.mxu0
        %v1267 = vadd.f32 %v1110, %v1266
        %1268 = vmatmul.bf16.gmra.mxu0 %v1080
        %v1269 = vpop.f32.mrf.mxu0
        %v1270 = vadd.f32 %v1110, %v1269
        %v1271 = vpop.f32.mrf.mxu0
        %v1272 = vadd.f32 %v1110, %v1271
        %1273 = vmatmul.bf16.gmra.mxu0 %v1081
        %v1274 = vpop.f32.mrf.mxu0
        %v1275 = vadd.f32 %v1110, %v1274
        %v1276 = vpop.f32.mrf.mxu0
        %v1277 = vadd.f32 %v1110, %v1276
        %1278 = vmatmul.bf16.gmra.mxu0 %v1082
        %v1279 = vpop.f32.mrf.mxu0
        %v1280 = vadd.f32 %v1110, %v1279
        %v1281 = vpop.f32.mrf.mxu0
        %v1282 = vadd.f32 %v1110, %v1281
        %1283 = vmatmul.bf16.gmra.mxu0 %v1083
        %v1284 = vpop.f32.mrf.mxu0
        %v1285 = vadd.f32 %v1110, %v1284
        %v1286 = vpop.f32.mrf.mxu0
        %v1287 = vadd.f32 %v1110, %v1286
        %1288 = vmatmul.bf16.gmra.mxu0 %v1084
        %v1289 = vpop.f32.mrf.mxu0
        %v1290 = vadd.f32 %v1110, %v1289
        %v1291 = vpop.f32.mrf.mxu0
        %v1292 = vadd.f32 %v1110, %v1291
        %1293 = vmatmul.bf16.gmra.mxu0 %v1085
        %v1294 = vpop.f32.mrf.mxu0
        %v1295 = vadd.f32 %v1110, %v1294
        %v1296 = vpop.f32.mrf.mxu0
        %v1297 = vadd.f32 %v1110, %v1296
        %1298 = vmatmul.bf16.gmra.mxu0 %v1086
        %v1299 = vpop.f32.mrf.mxu0
        %v1300 = vadd.f32 %v1110, %v1299
        %v1301 = vpop.f32.mrf.mxu0
        %v1302 = vadd.f32 %v1110, %v1301
        %1303 = vmatmul.bf16.gmra.mxu0 %v1087
        %v1304 = vpop.f32.mrf.mxu0
        %v1305 = vadd.f32 %v1110, %v1304
        %v1306 = vpop.f32.mrf.mxu0
        %v1307 = vadd.f32 %v1110, %v1306
        %1308 = vmatmul.bf16.gmra.mxu0 %v1088
        %v1309 = vpop.f32.mrf.mxu0
        %v1310 = vadd.f32 %v1110, %v1309
        %v1311 = vpop.f32.mrf.mxu0
        %v1312 = vadd.f32 %v1110, %v1311
        %1313 = vmatmul.bf16.gmra.mxu0 %v1089
        %v1314 = vpop.f32.mrf.mxu0
        %v1315 = vadd.f32 %v1110, %v1314
        %v1316 = vpop.f32.mrf.mxu0
        %v1317 = vadd.f32 %v1110, %v1316
        %1318 = vmatmul.bf16.gmra.mxu0 %v1090
        %v1319 = vpop.f32.mrf.mxu0
        %v1320 = vadd.f32 %v1110, %v1319
        %v1321 = vpop.f32.mrf.mxu0
        %v1322 = vadd.f32 %v1110, %v1321
        %1323 = vmatmul.bf16.gmra.mxu0 %v1091
        %v1324 = vpop.f32.mrf.mxu0
        %v1325 = vadd.f32 %v1110, %v1324
        %v1326 = vpop.f32.mrf.mxu0
        %v1327 = vadd.f32 %v1110, %v1326
        %1328 = vdwg.mxu0
        %v1329 = vpack.c.bf16 %v1170, %v1170
        %v1330 = vpack.c.bf16 %v1172, %v1172
        %v1331 = vpack.c.bf16 %v1175, %v1175
        %v1332 = vpack.c.bf16 %v1177, %v1177
        %v1333 = vpack.c.bf16 %v1180, %v1180
        %v1334 = vpack.c.bf16 %v1182, %v1182
        %v1335 = vpack.c.bf16 %v1185, %v1185
        %v1336 = vpack.c.bf16 %v1187, %v1187
        %v1337 = vpack.c.bf16 %v1190, %v1190
        %v1338 = vpack.c.bf16 %v1192, %v1192
        %v1339 = vpack.c.bf16 %v1195, %v1195
        %v1340 = vpack.c.bf16 %v1197, %v1197
        %v1341 = vpack.c.bf16 %v1200, %v1200
        %v1342 = vpack.c.bf16 %v1202, %v1202
        %v1343 = vpack.c.bf16 %v1205, %v1205
        %v1344 = vpack.c.bf16 %v1207, %v1207
        %v1345 = vpack.c.bf16 %v1210, %v1210
        %v1346 = vpack.c.bf16 %v1212, %v1212
        %v1347 = vpack.c.bf16 %v1215, %v1215
        %v1348 = vpack.c.bf16 %v1217, %v1217
        %v1349 = vpack.c.bf16 %v1220, %v1220
        %v1350 = vpack.c.bf16 %v1222, %v1222
        %v1351 = vpack.c.bf16 %v1225, %v1225
        %v1352 = vpack.c.bf16 %v1227, %v1227
        %v1353 = vpack.c.bf16 %v1230, %v1230
        %v1354 = vpack.c.bf16 %v1232, %v1232
        %v1355 = vpack.c.bf16 %v1235, %v1235
        %v1356 = vpack.c.bf16 %v1237, %v1237
        %v1357 = vpack.c.bf16 %v1240, %v1240
        %v1358 = vpack.c.bf16 %v1242, %v1242
        %v1359 = vpack.c.bf16 %v1245, %v1245
        %v1360 = vpack.c.bf16 %v1247, %v1247
        %v1361 = vpack.c.bf16 %v1250, %v1250
        %v1362 = vpack.c.bf16 %v1252, %v1252
        %v1363 = vpack.c.bf16 %v1255, %v1255
        %v1364 = vpack.c.bf16 %v1257, %v1257
        %v1365 = vpack.c.bf16 %v1260, %v1260
        %v1366 = vpack.c.bf16 %v1262, %v1262
        %v1367 = vpack.c.bf16 %v1265, %v1265
        %v1368 = vpack.c.bf16 %v1267, %v1267
        %v1369 = vpack.c.bf16 %v1270, %v1270
        %v1370 = vpack.c.bf16 %v1272, %v1272
        %v1371 = vpack.c.bf16 %v1275, %v1275
        %v1372 = vpack.c.bf16 %v1277, %v1277
        %v1373 = vpack.c.bf16 %v1280, %v1280
        %v1374 = vpack.c.bf16 %v1282, %v1282
        %v1375 = vpack.c.bf16 %v1285, %v1285
        %v1376 = vpack.c.bf16 %v1287, %v1287
        %v1377 = vpack.c.bf16 %v1290, %v1290
        %v1378 = vpack.c.bf16 %v1292, %v1292
        %v1379 = vpack.c.bf16 %v1295, %v1295
        %v1380 = vpack.c.bf16 %v1297, %v1297
        %v1381 = vpack.c.bf16 %v1300, %v1300
        %v1382 = vpack.c.bf16 %v1302, %v1302
        %v1383 = vpack.c.bf16 %v1305, %v1305
        %v1384 = vpack.c.bf16 %v1307, %v1307
        %v1385 = vpack.c.bf16 %v1310, %v1310
        %v1386 = vpack.c.bf16 %v1312, %v1312
        %v1387 = vpack.c.bf16 %v1315, %v1315
        %v1388 = vpack.c.bf16 %v1317, %v1317
        %v1389 = vpack.c.bf16 %v1320, %v1320
        %v1390 = vpack.c.bf16 %v1322, %v1322
        %v1391 = vpack.c.bf16 %v1325, %v1325
        %v1392 = vpack.c.bf16 %v1327, %v1327
        %1393 = vst [vmem:[%s272] sm:$0xf] %v1329
        %1394 = vst [vmem:[%s272 + $0x4] sm:$0xf] %v1330
        %1395 = vst [vmem:[%s272 + $0x8] sm:$0xf] %v1331
        %1396 = vst [vmem:[%s272 + $0xc] sm:$0xf] %v1332
        %1397 = vst [vmem:[%s272 + $0x10] sm:$0xf] %v1333
        %1398 = vst [vmem:[%s272 + $0x14] sm:$0xf] %v1334
        %1399 = vst [vmem:[%s272 + $0x18] sm:$0xf] %v1335
        %1400 = vst [vmem:[%s272 + $0x1c] sm:$0xf] %v1336
        %1401 = vst [vmem:[%s272 + $0x20] sm:$0xf] %v1337
        %1402 = vst [vmem:[%s272 + $0x24] sm:$0xf] %v1338
        %1403 = vst [vmem:[%s272 + $0x28] sm:$0xf] %v1339
        %1404 = vst [vmem:[%s272 + $0x2c] sm:$0xf] %v1340
        %1405 = vst [vmem:[%s272 + $0x30] sm:$0xf] %v1341
        %1406 = vst [vmem:[%s272 + $0x34] sm:$0xf] %v1342
        %1407 = vst [vmem:[%s272 + $0x38] sm:$0xf] %v1343
        %1408 = vst [vmem:[%s272 + $0x3c] sm:$0xf] %v1344
        %1409 = vst [vmem:[%s272 + $0x40] sm:$0xf] %v1345
        %1410 = vst [vmem:[%s272 + $0x44] sm:$0xf] %v1346
        %1411 = vst [vmem:[%s272 + $0x48] sm:$0xf] %v1347
        %1412 = vst [vmem:[%s272 + $0x4c] sm:$0xf] %v1348
        %1413 = vst [vmem:[%s272 + $0x50] sm:$0xf] %v1349
        %1414 = vst [vmem:[%s272 + $0x54] sm:$0xf] %v1350
        %1415 = vst [vmem:[%s272 + $0x58] sm:$0xf] %v1351
        %1416 = vst [vmem:[%s272 + $0x5c] sm:$0xf] %v1352
        %1417 = vst [vmem:[%s272 + $0x60] sm:$0xf] %v1353
        %1418 = vst [vmem:[%s272 + $0x64] sm:$0xf] %v1354
        %1419 = vst [vmem:[%s272 + $0x68] sm:$0xf] %v1355
        %1420 = vst [vmem:[%s272 + $0x6c] sm:$0xf] %v1356
        %1421 = vst [vmem:[%s272 + $0x70] sm:$0xf] %v1357
        %1422 = vst [vmem:[%s272 + $0x74] sm:$0xf] %v1358
        %1423 = vst [vmem:[%s272 + $0x78] sm:$0xf] %v1359
        %1424 = vst [vmem:[%s272 + $0x7c] sm:$0xf] %v1360
        %1425 = vst [vmem:[%s272 + $0x80] sm:$0xf] %v1361
        %1426 = vst [vmem:[%s272 + $0x84] sm:$0xf] %v1362
        %1427 = vst [vmem:[%s272 + $0x88] sm:$0xf] %v1363
        %1428 = vst [vmem:[%s272 + $0x8c] sm:$0xf] %v1364
        %1429 = vst [vmem:[%s272 + $0x90] sm:$0xf] %v1365
        %1430 = vst [vmem:[%s272 + $0x94] sm:$0xf] %v1366
        %1431 = vst [vmem:[%s272 + $0x98] sm:$0xf] %v1367
        %1432 = vst [vmem:[%s272 + $0x9c] sm:$0xf] %v1368
        %1433 = vst [vmem:[%s272 + $0xa0] sm:$0xf] %v1369
        %1434 = vst [vmem:[%s272 + $0xa4] sm:$0xf] %v1370
        %1435 = vst [vmem:[%s272 + $0xa8] sm:$0xf] %v1371
        %1436 = vst [vmem:[%s272 + $0xac] sm:$0xf] %v1372
        %1437 = vst [vmem:[%s272 + $0xb0] sm:$0xf] %v1373
        %1438 = vst [vmem:[%s272 + $0xb4] sm:$0xf] %v1374
        %1439 = vst [vmem:[%s272 + $0xb8] sm:$0xf] %v1375
        %1440 = vst [vmem:[%s272 + $0xbc] sm:$0xf] %v1376
        %1441 = vst [vmem:[%s272 + $0xc0] sm:$0xf] %v1377
        %1442 = vst [vmem:[%s272 + $0xc4] sm:$0xf] %v1378
        %1443 = vst [vmem:[%s272 + $0xc8] sm:$0xf] %v1379
        %1444 = vst [vmem:[%s272 + $0xcc] sm:$0xf] %v1380
        %1445 = vst [vmem:[%s272 + $0xd0] sm:$0xf] %v1381
        %1446 = vst [vmem:[%s272 + $0xd4] sm:$0xf] %v1382
        %1447 = vst [vmem:[%s272 + $0xd8] sm:$0xf] %v1383
        %1448 = vst [vmem:[%s272 + $0xdc] sm:$0xf] %v1384
        %1449 = vst [vmem:[%s272 + $0xe0] sm:$0xf] %v1385
        %1450 = vst [vmem:[%s272 + $0xe4] sm:$0xf] %v1386
        %1451 = vst [vmem:[%s272 + $0xe8] sm:$0xf] %v1387
        %1452 = vst [vmem:[%s272 + $0xec] sm:$0xf] %v1388
        %1453 = vst [vmem:[%s272 + $0xf0] sm:$0xf] %v1389
        %1454 = vst [vmem:[%s272 + $0xf4] sm:$0xf] %v1390
        %1455 = vst [vmem:[%s272 + $0xf8] sm:$0xf] %v1391
        %1456 = vst [vmem:[%s272 + $0xfc] sm:$0xf] %v1392
        %s1457 = sand.u32 %s181, 1
        %s1458 = scalar_lea.sflag [#allocation3], %s1457
        %s1459 = sand.u32 %s181, 1
        %s1460 = smul.addr %s1459, 256
        %s1461 = scalar_lea.vmem [#allocation2], %s1460
        // Predicated region
        $region49: #{tpu_custom_call.1} parent=47 // pred_check
          %p1462 = pneg %p191
        $region50: #{tpu_custom_call.1} parent=47 // pred_check_branch
          %1464 = sbr.rel (%p1462) target = $region52
        $region51: #{tpu_custom_call.1} parent=47 // pred_region
          %s1465 = smul.u32 64, %s21
          %1467 = vsyncadd %s1458, 0
          %s1468 = smul.addr %s1465, 4
          %s1469 = scalar_lea.hbm %s7, %s1468
          %s1470 = sshll.u32 %s1461, 4
          %s1471 = int_to_ptr.vmem [resolvable:$true] %s1470
          %s1472 = sshll.u32 %s1469, 4
          %s1473 = int_to_ptr.hbm [resolvable:$true] %s1472
          %1478 = dma.vmem_to_hbm [thread:$0]  %s1471, 4096, %s1473, %s1458, 64, 64, 4
        $region52: #{tpu_custom_call.1} parent=47 // pred_fallthru
          _
      $region48: #{tpu_custom_call.1} parent=5 // pred_fallthru
        _
      %p1479 = scmp.le.s32.totalorder 2, %s16
      // Predicated region
      $region53: #{tpu_custom_call.1} parent=5 // pred_check
        %p1480 = pneg %p1479
      $region54: #{tpu_custom_call.1} parent=5 // pred_check_branch
        %1482 = sbr.rel (%p1480) target = $region56
      $region55: #{tpu_custom_call.1} parent=5 // pred_region
        %s1483 = ssub.s32 %s16, 2
        // Predicated region
        $region57: #{tpu_custom_call.1} parent=55 // pred_check
          %p1484 = pneg %p197
        $region58: #{tpu_custom_call.1} parent=55 // pred_check_branch
          %1486 = sbr.rel (%p1484) target = $region60
        $region59: #{tpu_custom_call.1} parent=55 // pred_region
          %s1487 = sand.u32 %s182, 1
          %s1488 = scalar_lea.sflag [#allocation3], %s1487
          %s1489 = sand.u32 %s182, 1
          %s1490 = smul.addr %s1489, 256
          %s1491 = scalar_lea.vmem [#allocation2], %s1490
          %1493 = dma.done %s1488, 4096
        $region60: #{tpu_custom_call.1} parent=55 // pred_fallthru
          _
      $region56: #{tpu_custom_call.1} parent=5 // pred_fallthru
        _
    $region6: #{tpu_custom_call.1} parent=1 // loop_footer
      %s20 = sadd.s32 1, %s16
    $region7: #{tpu_custom_call.1} parent=1 // loop_footer_branch
      %15 = sbr.rel target = $region3
    $region8: #{tpu_custom_call.1} parent=1 // loop_exit
      _
    %1494 = vsyncpa [#allocation3], 1
    %s1495 = scalar_lea.sflag [#allocation3], 1
    %1496 = vsyncpa %s1495, 1

</llo_original>
